<compile_context>
chip_gen: v5e
topology: v5e:2x2
jax: 0.10.0
libtpu: 0.0.40
codegen_flags: <defaults>
</compile_context>

<pallas_src>
import functools

import jax
import jax.numpy as jnp
from jax.experimental import pallas as pl
from jax.experimental.pallas import tpu as pltpu


_BN_EPS = 1e-5
_CMID = 64            # hidden channel width of layers 1-3


def _round_up(x, m):
    return ((x + m - 1) // m) * m


# ----------------------------------------------------------------------------
# The fused kernel: one grid step == B_TILE full images through all 4 layers.
# ----------------------------------------------------------------------------
def _fused_cnn_encoder_kernel(
    x_ref,                      # (bt*m1r, k1p)  bf16   host-side im2col patches
    w1_ref, sb1_ref,            # (k1p, 64)  bf16 ; (2, 64)  f32  [scale; bias]
    w2_ref, sb2_ref,            # (576, 64)  bf16 ; (2, 64)  f32
    w3_ref, sb3_ref,            # (576, 64)  bf16 ; (2, 64)  f32
    w4_ref, sb4_ref,            # (576, cp)  bf16 ; (2, cp)  f32
    o_ref,                      # (bt, npos, cp) f32
    s1_ref,                     # VMEM (bt*m1r, 64)  f32  conv1 out (pool1 src)
    a2_ref,                     # VMEM (bt*r2, 64)   f32  pool1 out + zero tail
    s2_ref,                     # VMEM (bt*m2or, 64) f32  conv2 out (pool2 src)
    a34_ref,                    # VMEM (bt*r34, 64)  f32  zero-padded conv3/4 grid
    *, bt, m1r, w1c, h1p, w1p, m2or, r2, h2p, w2p, wpd, r34, m3or):
    f32 = jnp.float32
    bf16 = jnp.bfloat16

    def bn_relu(acc, sb_ref):
        # folded (conv-bias + eval-mode BN) affine + ReLU, f32 on the VPU
        return jnp.maximum(acc * sb_ref[0:1, :] + sb_ref[1:2, :], 0.0)

    def pool_row(src_ref, src_base, src_w, dst_w, i):
        # One pooled output row i of MaxPool2d(2): VPU max over the 4
        # stride-2 row slices of the (row-flat) conv output buffer.
        rb = src_base + 2 * i * src_w
        p00 = src_ref[pl.ds(rb, dst_w, stride=2), :]
        p01 = src_ref[pl.ds(rb + 1, dst_w, stride=2), :]
        p10 = src_ref[pl.ds(rb + src_w, dst_w, stride=2), :]
        p11 = src_ref[pl.ds(rb + src_w + 1, dst_w, stride=2), :]
        return jnp.maximum(jnp.maximum(p00, p01), jnp.maximum(p10, p11))

    def tap_concat(src_ref, img_stride, grid_w, rows_out):
        # Fold the 9 conv taps into K: 9 shifted contiguous row slices of the
        # tap-source buffer, cast to bf16 and lane-concatenated into the
        # (bt*rows_out, 9*64) matmul LHS.  Images never bleed into each other
        # because each image owns an `img_stride`-row block with a zero tail.
        blocks = []
        for img in range(bt):
            base = img * img_stride
            taps = [src_ref[base + di * grid_w + dj:
                            base + di * grid_w + dj + rows_out, :].astype(bf16)
                    for di in range(3) for dj in range(3)]
            blocks.append(jnp.concatenate(taps, axis=1))
        return blocks[0] if bt == 1 else jnp.concatenate(blocks, axis=0)

    # ---- Layer 1: conv(pad=0)+BN+ReLU -- one matmul for the whole sub-batch --
    act1 = bn_relu(jnp.dot(x_ref[...], w1_ref[...], preferred_element_type=f32),
                   sb1_ref)
    s1_ref[...] = act1

    # ---- MaxPool2d(2): (h-2)x(w-2) -> h1p x w1p, into the conv2 tap source ---
    m2v = h1p * w1p
    for img in range(bt):
        for i in range(h1p):
            a2_ref[img * r2 + i * w1p: img * r2 + (i + 1) * w1p, :] = (
                pool_row(s1_ref, img * m1r, w1c, w1p, i))
        # zero only the tail rows; the valid rows are fully overwritten above
        a2_ref[img * r2 + m2v: (img + 1) * r2, :] = jnp.zeros(
            (r2 - m2v, _CMID), f32)

    # ---- Layer 2: conv(pad=0)+BN+ReLU, taps folded into K (K=576) ------------
    act2 = bn_relu(jnp.dot(tap_concat(a2_ref, r2, w1p, m2or), w2_ref[...],
                           preferred_element_type=f32), sb2_ref)
    s2_ref[...] = act2

    # ---- MaxPool2d(2) -> embed into the zero-padded grid for conv3/conv4 -----
    a34_ref[...] = jnp.zeros_like(a34_ref)   # padding rows must be 0 every step
    for img in range(bt):
        for y in range(h2p):
            dst = img * r34 + (y + 1) * wpd + 1
            a34_ref[dst: dst + w2p, :] = pool_row(s2_ref, img * m2or, w1p, w2p, y)

    # ---- Layer 3: conv(pad=1)+BN+ReLU, re-embed valid rows in place ----------
    act3 = bn_relu(jnp.dot(tap_concat(a34_ref, r34, wpd, m3or), w3_ref[...],
                           preferred_element_type=f32), sb3_ref)
    for img in range(bt):
        for y in range(h2p):
            src = act3[img * m3or + y * wpd: img * m3or + y * wpd + w2p, :]
            dst = img * r34 + (y + 1) * wpd + 1
            a34_ref[dst: dst + w2p, :] = src

    # ---- Layer 4: conv(pad=1)+BN+ReLU, valid rows copied straight to output --
    act4 = bn_relu(jnp.dot(tap_concat(a34_ref, r34, wpd, m3or), w4_ref[...],
                           preferred_element_type=f32), sb4_ref)
    for img in range(bt):
        for y in range(h2p):
            o_ref[img, y * w2p:(y + 1) * w2p, :] = (
                act4[img * m3or + y * wpd: img * m3or + y * wpd + w2p, :])


# ----------------------------------------------------------------------------
# Parameter construction (deterministic; folds conv-bias + eval-mode BN).
# ----------------------------------------------------------------------------
def _make_layer_params(key, cin, cout):
    kw, kb, kg, kbeta = jax.random.split(key, 4)
    w = jax.random.normal(kw, (3, 3, cin, cout), jnp.float32) * 0.1
    conv_b = jax.random.normal(kb, (cout,), jnp.float32) * 0.05
    gamma = 1.0 + 0.1 * jax.random.normal(kg, (cout,), jnp.float32)
    beta = 0.05 * jax.random.normal(kbeta, (cout,), jnp.float32)
    run_mean = jnp.zeros((cout,), jnp.float32)
    run_var = jnp.ones((cout,), jnp.float32)
    scale = gamma / jnp.sqrt(run_var + _BN_EPS)
    bias = (conv_b - run_mean) * scale + beta
    return w, scale, bias


def _pack_layer(w, scale, bias, k_pad, cout_pad):
    cin, cout = w.shape[2], w.shape[3]
    wk = w.reshape(9 * cin, cout)                      # K order: (tap, cin)
    wk = jnp.pad(wk, ((0, k_pad - 9 * cin), (0, cout_pad - cout)))
    sb = jnp.stack([jnp.pad(scale, (0, cout_pad - cout)),
                    jnp.pad(bias, (0, cout_pad - cout))], axis=0)
    return wk.astype(jnp.bfloat16), sb.astype(jnp.float32)


def init_cnn_encoder_params(key, feature_dim, in_channels=3):
    k1, k2, k3, k4 = jax.random.split(key, 4)
    cout_pad = _round_up(feature_dim, 128)
    k1p = _round_up(9 * in_channels, 8)
    w1, s1, b1 = _make_layer_params(k1, in_channels, _CMID)
    w2, s2, b2 = _make_layer_params(k2, _CMID, _CMID)
    w3, s3, b3 = _make_layer_params(k3, _CMID, _CMID)
    w4, s4, b4 = _make_layer_params(k4, _CMID, feature_dim)
    p = {}
    p["w1"], p["sb1"] = _pack_layer(w1, s1, b1, k1p, _CMID)
    p["w2"], p["sb2"] = _pack_layer(w2, s2, b2, 9 * _CMID, _CMID)
    p["w3"], p["sb3"] = _pack_layer(w3, s3, b3, 9 * _CMID, _CMID)
    p["w4"], p["sb4"] = _pack_layer(w4, s4, b4, 9 * _CMID, cout_pad)
    return p


def _pick_b_tile(n):
    # largest divisor of n (<= 8) that keeps >= 2 grid steps (v7x megacore)
    best = 1
    for b in range(1, min(n, 8) + 1):
        if n % b == 0 and n // b >= 2:
            best = b
    return best


# ----------------------------------------------------------------------------
# Forward pass (mirrors CNNEncoder.forward)
# ----------------------------------------------------------------------------
@functools.partial(jax.jit, static_argnames=("feature_dim",))
def cnn_encoder_forward(params, x_nchw, feature_dim):
    n, cin, h, w = x_nchw.shape
    cout_pad = params["w4"].shape[1]
    k1p = params["w1"].shape[0]

    # --- static network geometry (mirrors the PyTorch module) ---
    h1c, w1c = h - 2, w - 2            # conv1 output (padding=0)
    h1p, w1p = h1c // 2, w1c // 2      # MaxPool2d(2), floor
    h2c, w2c = h1p - 2, w1p - 2        # conv2 output (padding=0)
    h2p, w2p = h2c // 2, w2c // 2      # MaxPool2d(2), floor
    hpd, wpd = h2p + 2, w2p + 2        # zero-padded grid for conv3/conv4 (pad=1)

    m1 = h1c * w1c
    m1r = _round_up(m1, 8)                     # conv1 rows per image
    m2or = _round_up(h1p * w1p, 8)             # conv2 output rows per image
    r2 = _round_up(m2or + 2 * w1p + 2, 8)      # conv2 tap-source rows per image
    m3or = _round_up(hpd * wpd, 8)             # conv3/4 output rows per image
    r34 = _round_up(m3or + 2 * wpd + 2, 8)     # conv3/4 tap-source rows per image
    npos = h2p * w2p                           # valid spatial positions per image

    b_tile = _pick_b_tile(n)
    grid = (n // b_tile,)

    # --- host-side layer-1 im2col: (N, m1, 9*cin) patches, padded, bf16 ---
    x_nhwc = jnp.transpose(x_nchw, (0, 2, 3, 1)).astype(jnp.float32)
    taps = [x_nhwc[:, di:di + h1c, dj:dj + w1c, :]
            for di in range(3) for dj in range(3)]
    patches = jnp.concatenate(taps, axis=-1).reshape(n, m1, 9 * cin)
    patches = jnp.pad(patches, ((0, 0), (0, m1r - m1), (0, k1p - 9 * cin)))
    x_flat = patches.reshape(n * m1r, k1p).astype(jnp.bfloat16)

    kernel = functools.partial(
        _fused_cnn_encoder_kernel,
        bt=b_tile, m1r=m1r, w1c=w1c, h1p=h1p, w1p=w1p, m2or=m2or, r2=r2,
        h2p=h2p, w2p=w2p, wpd=wpd, r34=r34, m3or=m3or)

    out = pl.pallas_call(
        kernel,
        out_shape=jax.ShapeDtypeStruct((n, npos, cout_pad), jnp.float32),
        grid=grid,
        in_specs=[
            pl.BlockSpec((b_tile * m1r, k1p), lambda g: (g, 0)),
            pl.BlockSpec((k1p, _CMID), lambda g: (0, 0)),
            pl.BlockSpec((2, _CMID), lambda g: (0, 0)),
            pl.BlockSpec((9 * _CMID, _CMID), lambda g: (0, 0)),
            pl.BlockSpec((2, _CMID), lambda g: (0, 0)),
            pl.BlockSpec((9 * _CMID, _CMID), lambda g: (0, 0)),
            pl.BlockSpec((2, _CMID), lambda g: (0, 0)),
            pl.BlockSpec((9 * _CMID, cout_pad), lambda g: (0, 0)),
            pl.BlockSpec((2, cout_pad), lambda g: (0, 0)),
        ],
        out_specs=pl.BlockSpec((b_tile, npos, cout_pad), lambda g: (g, 0, 0)),
        scratch_shapes=[
            pltpu.VMEM((b_tile * m1r, _CMID), jnp.float32),
            pltpu.VMEM((b_tile * r2, _CMID), jnp.float32),
            pltpu.VMEM((b_tile * m2or, _CMID), jnp.float32),
            pltpu.VMEM((b_tile * r34, _CMID), jnp.float32),
        ],
        compiler_params=pltpu.CompilerParams(
            dimension_semantics=("parallel",),
            vmem_limit_bytes=32 * 1024 * 1024),
    )(x_flat, params["w1"], params["sb1"], params["w2"], params["sb2"],
      params["w3"], params["sb3"], params["w4"], params["sb4"])

    # Flatten in PyTorch NCHW order: (N, C, H4, W4).view(N, -1)
    out = out[:, :, :feature_dim]                         # (N, npos, feat)
    out = jnp.transpose(out, (0, 2, 1)).reshape(n, feature_dim * npos)
    return out


if __name__ == "__main__":
    key = jax.random.PRNGKey(0)
    kp, kx = jax.random.split(key)

    feature_dim = 32
    params = init_cnn_encoder_params(kp, feature_dim)

    # Small input consistent with the module: batch=2, 3 channels, 16x16 spatial.
    x = jax.random.normal(kx, (2, 3, 16, 16), jnp.float32)

    out = cnn_encoder_forward(params, x, feature_dim=feature_dim)
    out = jax.block_until_ready(out)

    # 16 -> conv(p0) 14 -> pool 7 -> conv(p0) 5 -> pool 2 -> conv(p1) 2 -> conv(p1) 2
    assert out.shape == (2, feature_dim * 2 * 2), out.shape
    assert bool(jnp.all(jnp.isfinite(out)))

    print("KERNEL_OK")
</pallas_src>

<mosaic_0001>
module attributes {stable_mosaic.version = 11 : i64} {
  func.func @_fused_cnn_encoder_kernel(%arg0: i32, %arg1: memref<200x32xbf16, #tpu.memory_space<vmem>>, %arg2: memref<32x64xbf16, #tpu.memory_space<vmem>>, %arg3: memref<2x64xf32, #tpu.memory_space<vmem>>, %arg4: memref<576x64xbf16, #tpu.memory_space<vmem>>, %arg5: memref<2x64xf32, #tpu.memory_space<vmem>>, %arg6: memref<576x64xbf16, #tpu.memory_space<vmem>>, %arg7: memref<2x64xf32, #tpu.memory_space<vmem>>, %arg8: memref<576x128xbf16, #tpu.memory_space<vmem>>, %arg9: memref<2x128xf32, #tpu.memory_space<vmem>>, %arg10: memref<1x4x128xf32, #tpu.memory_space<vmem>>, %arg11: memref<200x64xf32, #tpu.memory_space<vmem>>, %arg12: memref<72x64xf32, #tpu.memory_space<vmem>>, %arg13: memref<56x64xf32, #tpu.memory_space<vmem>>, %arg14: memref<32x64xf32, #tpu.memory_space<vmem>>) attributes {dimension_semantics = [#tpu.dimension_semantics<parallel>], iteration_bounds = array<i64: 2>, scalar_prefetch = 0 : i64, scratch_operands = 4 : i64, tpu.core_type = #tpu.core_type<tc>, window_params = [{transform_indices = @transform_0, window_bounds = array<i64: 200, 32>}, {pipeline_mode = #tpu.pipeline_mode<synchronous>, transform_indices = @transform_1, window_bounds = array<i64: 32, 64>}, {pipeline_mode = #tpu.pipeline_mode<synchronous>, transform_indices = @transform_2, window_bounds = array<i64: 2, 64>}, {pipeline_mode = #tpu.pipeline_mode<synchronous>, transform_indices = @transform_3, window_bounds = array<i64: 576, 64>}, {pipeline_mode = #tpu.pipeline_mode<synchronous>, transform_indices = @transform_4, window_bounds = array<i64: 2, 64>}, {pipeline_mode = #tpu.pipeline_mode<synchronous>, transform_indices = @transform_5, window_bounds = array<i64: 576, 64>}, {pipeline_mode = #tpu.pipeline_mode<synchronous>, transform_indices = @transform_6, window_bounds = array<i64: 2, 64>}, {pipeline_mode = #tpu.pipeline_mode<synchronous>, transform_indices = @transform_7, window_bounds = array<i64: 576, 128>}, {pipeline_mode = #tpu.pipeline_mode<synchronous>, transform_indices = @transform_8, window_bounds = array<i64: 2, 128>}, {transform_indices = @transform_9, window_bounds = array<i64: 1, 4, 128>}]} {
    %c0 = arith.constant 0 : index
    %c0_0 = arith.constant 0 : index
    %0 = vector.load %arg1[%c0, %c0_0] : memref<200x32xbf16, #tpu.memory_space<vmem>>, vector<200x32xbf16>
    %c0_1 = arith.constant 0 : index
    %c0_2 = arith.constant 0 : index
    %1 = vector.load %arg2[%c0_1, %c0_2] : memref<32x64xbf16, #tpu.memory_space<vmem>>, vector<32x64xbf16>
    %cst = arith.constant dense<0.000000e+00> : vector<200x64xf32>
    %2 = tpu.matmul %0, %1, %cst {dimension_numbers = #tpu.dot_dimension_numbers<[1], [0], [0], [1], [0, 0, 1, 1], [], []>} : vector<200x32xbf16>, vector<32x64xbf16>, vector<200x64xf32> -> vector<200x64xf32>
    %c0_3 = arith.constant 0 : index
    %c0_4 = arith.constant 0 : index
    %3 = vector.load %arg3[%c0_3, %c0_4] : memref<2x64xf32, #tpu.memory_space<vmem>>, vector<1x64xf32>
    %4 = vector.broadcast %3 : vector<1x64xf32> to vector<200x64xf32>
    %5 = arith.mulf %2, %4 : vector<200x64xf32>
    %c1 = arith.constant 1 : index
    %c0_5 = arith.constant 0 : index
    %6 = vector.load %arg3[%c1, %c0_5] : memref<2x64xf32, #tpu.memory_space<vmem>>, vector<1x64xf32>
    %7 = vector.broadcast %6 : vector<1x64xf32> to vector<200x64xf32>
    %8 = arith.addf %5, %7 : vector<200x64xf32>
    %cst_6 = arith.constant 0.000000e+00 : f32
    %9 = vector.broadcast %cst_6 : f32 to vector<200x64xf32>
    %10 = arith.maximumf %8, %9 : vector<200x64xf32>
    %c0_7 = arith.constant 0 : index
    %c0_8 = arith.constant 0 : index
    %11 = vector.load %arg11[%c0_7, %c0_8] : memref<200x64xf32, #tpu.memory_space<vmem>>, vector<200x64xf32>
    tpu.vector_store %arg11[%c0_7, %c0_8], %10 {strides = array<i32>} : memref<200x64xf32, #tpu.memory_space<vmem>>, vector<200x64xf32>,
    %c0_9 = arith.constant 0 : index
    %c0_10 = arith.constant 0 : index
    %12 = tpu.strided_load %arg11[%c0_9, %c0_10] {strides = array<i32: 2, 1>} : memref<200x64xf32, #tpu.memory_space<vmem>>, vector<7x64xf32>
    %c1_11 = arith.constant 1 : index
    %c0_12 = arith.constant 0 : index
    %13 = tpu.strided_load %arg11[%c1_11, %c0_12] {strides = array<i32: 2, 1>} : memref<200x64xf32, #tpu.memory_space<vmem>>, vector<7x64xf32>
    %c14 = arith.constant 14 : index
    %c0_13 = arith.constant 0 : index
    %14 = tpu.strided_load %arg11[%c14, %c0_13] {strides = array<i32: 2, 1>} : memref<200x64xf32, #tpu.memory_space<vmem>>, vector<7x64xf32>
    %c15 = arith.constant 15 : index
    %c0_14 = arith.constant 0 : index
    %15 = tpu.strided_load %arg11[%c15, %c0_14] {strides = array<i32: 2, 1>} : memref<200x64xf32, #tpu.memory_space<vmem>>, vector<7x64xf32>
    %16 = arith.maximumf %12, %13 : vector<7x64xf32>
    %17 = arith.maximumf %14, %15 : vector<7x64xf32>
    %18 = arith.maximumf %16, %17 : vector<7x64xf32>
    %c0_15 = arith.constant 0 : index
    %c0_16 = arith.constant 0 : index
    %19 = vector.load %arg12[%c0_15, %c0_16] : memref<72x64xf32, #tpu.memory_space<vmem>>, vector<7x64xf32>
    tpu.vector_store %arg12[%c0_15, %c0_16], %18 {strides = array<i32>} : memref<72x64xf32, #tpu.memory_space<vmem>>, vector<7x64xf32>,
    %c28 = arith.constant 28 : index
    %c0_17 = arith.constant 0 : index
    %20 = tpu.strided_load %arg11[%c28, %c0_17] {strides = array<i32: 2, 1>} : memref<200x64xf32, #tpu.memory_space<vmem>>, vector<7x64xf32>
    %c29 = arith.constant 29 : index
    %c0_18 = arith.constant 0 : index
    %21 = tpu.strided_load %arg11[%c29, %c0_18] {strides = array<i32: 2, 1>} : memref<200x64xf32, #tpu.memory_space<vmem>>, vector<7x64xf32>
    %c42 = arith.constant 42 : index
    %c0_19 = arith.constant 0 : index
    %22 = tpu.strided_load %arg11[%c42, %c0_19] {strides = array<i32: 2, 1>} : memref<200x64xf32, #tpu.memory_space<vmem>>, vector<7x64xf32>
    %c43 = arith.constant 43 : index
    %c0_20 = arith.constant 0 : index
    %23 = tpu.strided_load %arg11[%c43, %c0_20] {strides = array<i32: 2, 1>} : memref<200x64xf32, #tpu.memory_space<vmem>>, vector<7x64xf32>
    %24 = arith.maximumf %20, %21 : vector<7x64xf32>
    %25 = arith.maximumf %22, %23 : vector<7x64xf32>
    %26 = arith.maximumf %24, %25 : vector<7x64xf32>
    %c7 = arith.constant 7 : index
    %c0_21 = arith.constant 0 : index
    %27 = vector.load %arg12[%c7, %c0_21] : memref<72x64xf32, #tpu.memory_space<vmem>>, vector<7x64xf32>
    tpu.vector_store %arg12[%c7, %c0_21], %26 {strides = array<i32>} : memref<72x64xf32, #tpu.memory_space<vmem>>, vector<7x64xf32>,
    %c56 = arith.constant 56 : index
    %c0_22 = arith.constant 0 : index
    %28 = tpu.strided_load %arg11[%c56, %c0_22] {strides = array<i32: 2, 1>} : memref<200x64xf32, #tpu.memory_space<vmem>>, vector<7x64xf32>
    %c57 = arith.constant 57 : index
    %c0_23 = arith.constant 0 : index
    %29 = tpu.strided_load %arg11[%c57, %c0_23] {strides = array<i32: 2, 1>} : memref<200x64xf32, #tpu.memory_space<vmem>>, vector<7x64xf32>
    %c70 = arith.constant 70 : index
    %c0_24 = arith.constant 0 : index
    %30 = tpu.strided_load %arg11[%c70, %c0_24] {strides = array<i32: 2, 1>} : memref<200x64xf32, #tpu.memory_space<vmem>>, vector<7x64xf32>
    %c71 = arith.constant 71 : index
    %c0_25 = arith.constant 0 : index
    %31 = tpu.strided_load %arg11[%c71, %c0_25] {strides = array<i32: 2, 1>} : memref<200x64xf32, #tpu.memory_space<vmem>>, vector<7x64xf32>
    %32 = arith.maximumf %28, %29 : vector<7x64xf32>
    %33 = arith.maximumf %30, %31 : vector<7x64xf32>
    %34 = arith.maximumf %32, %33 : vector<7x64xf32>
    %c14_26 = arith.constant 14 : index
    %c0_27 = arith.constant 0 : index
    %35 = vector.load %arg12[%c14_26, %c0_27] : memref<72x64xf32, #tpu.memory_space<vmem>>, vector<7x64xf32>
    tpu.vector_store %arg12[%c14_26, %c0_27], %34 {strides = array<i32>} : memref<72x64xf32, #tpu.memory_space<vmem>>, vector<7x64xf32>,
    %c84 = arith.constant 84 : index
    %c0_28 = arith.constant 0 : index
    %36 = tpu.strided_load %arg11[%c84, %c0_28] {strides = array<i32: 2, 1>} : memref<200x64xf32, #tpu.memory_space<vmem>>, vector<7x64xf32>
    %c85 = arith.constant 85 : index
    %c0_29 = arith.constant 0 : index
    %37 = tpu.strided_load %arg11[%c85, %c0_29] {strides = array<i32: 2, 1>} : memref<200x64xf32, #tpu.memory_space<vmem>>, vector<7x64xf32>
    %c98 = arith.constant 98 : index
    %c0_30 = arith.constant 0 : index
    %38 = tpu.strided_load %arg11[%c98, %c0_30] {strides = array<i32: 2, 1>} : memref<200x64xf32, #tpu.memory_space<vmem>>, vector<7x64xf32>
    %c99 = arith.constant 99 : index
    %c0_31 = arith.constant 0 : index
    %39 = tpu.strided_load %arg11[%c99, %c0_31] {strides = array<i32: 2, 1>} : memref<200x64xf32, #tpu.memory_space<vmem>>, vector<7x64xf32>
    %40 = arith.maximumf %36, %37 : vector<7x64xf32>
    %41 = arith.maximumf %38, %39 : vector<7x64xf32>
    %42 = arith.maximumf %40, %41 : vector<7x64xf32>
    %c21 = arith.constant 21 : index
    %c0_32 = arith.constant 0 : index
    %43 = vector.load %arg12[%c21, %c0_32] : memref<72x64xf32, #tpu.memory_space<vmem>>, vector<7x64xf32>
    tpu.vector_store %arg12[%c21, %c0_32], %42 {strides = array<i32>} : memref<72x64xf32, #tpu.memory_space<vmem>>, vector<7x64xf32>,
    %c112 = arith.constant 112 : index
    %c0_33 = arith.constant 0 : index
    %44 = tpu.strided_load %arg11[%c112, %c0_33] {strides = array<i32: 2, 1>} : memref<200x64xf32, #tpu.memory_space<vmem>>, vector<7x64xf32>
    %c113 = arith.constant 113 : index
    %c0_34 = arith.constant 0 : index
    %45 = tpu.strided_load %arg11[%c113, %c0_34] {strides = array<i32: 2, 1>} : memref<200x64xf32, #tpu.memory_space<vmem>>, vector<7x64xf32>
    %c126 = arith.constant 126 : index
    %c0_35 = arith.constant 0 : index
    %46 = tpu.strided_load %arg11[%c126, %c0_35] {strides = array<i32: 2, 1>} : memref<200x64xf32, #tpu.memory_space<vmem>>, vector<7x64xf32>
    %c127 = arith.constant 127 : index
    %c0_36 = arith.constant 0 : index
    %47 = tpu.strided_load %arg11[%c127, %c0_36] {strides = array<i32: 2, 1>} : memref<200x64xf32, #tpu.memory_space<vmem>>, vector<7x64xf32>
    %48 = arith.maximumf %44, %45 : vector<7x64xf32>
    %49 = arith.maximumf %46, %47 : vector<7x64xf32>
    %50 = arith.maximumf %48, %49 : vector<7x64xf32>
    %c28_37 = arith.constant 28 : index
    %c0_38 = arith.constant 0 : index
    %51 = vector.load %arg12[%c28_37, %c0_38] : memref<72x64xf32, #tpu.memory_space<vmem>>, vector<7x64xf32>
    tpu.vector_store %arg12[%c28_37, %c0_38], %50 {strides = array<i32>} : memref<72x64xf32, #tpu.memory_space<vmem>>, vector<7x64xf32>,
    %c140 = arith.constant 140 : index
    %c0_39 = arith.constant 0 : index
    %52 = tpu.strided_load %arg11[%c140, %c0_39] {strides = array<i32: 2, 1>} : memref<200x64xf32, #tpu.memory_space<vmem>>, vector<7x64xf32>
    %c141 = arith.constant 141 : index
    %c0_40 = arith.constant 0 : index
    %53 = tpu.strided_load %arg11[%c141, %c0_40] {strides = array<i32: 2, 1>} : memref<200x64xf32, #tpu.memory_space<vmem>>, vector<7x64xf32>
    %c154 = arith.constant 154 : index
    %c0_41 = arith.constant 0 : index
    %54 = tpu.strided_load %arg11[%c154, %c0_41] {strides = array<i32: 2, 1>} : memref<200x64xf32, #tpu.memory_space<vmem>>, vector<7x64xf32>
    %c155 = arith.constant 155 : index
    %c0_42 = arith.constant 0 : index
    %55 = tpu.strided_load %arg11[%c155, %c0_42] {strides = array<i32: 2, 1>} : memref<200x64xf32, #tpu.memory_space<vmem>>, vector<7x64xf32>
    %56 = arith.maximumf %52, %53 : vector<7x64xf32>
    %57 = arith.maximumf %54, %55 : vector<7x64xf32>
    %58 = arith.maximumf %56, %57 : vector<7x64xf32>
    %c35 = arith.constant 35 : index
    %c0_43 = arith.constant 0 : index
    %59 = vector.load %arg12[%c35, %c0_43] : memref<72x64xf32, #tpu.memory_space<vmem>>, vector<7x64xf32>
    tpu.vector_store %arg12[%c35, %c0_43], %58 {strides = array<i32>} : memref<72x64xf32, #tpu.memory_space<vmem>>, vector<7x64xf32>,
    %c168 = arith.constant 168 : index
    %c0_44 = arith.constant 0 : index
    %60 = tpu.strided_load %arg11[%c168, %c0_44] {strides = array<i32: 2, 1>} : memref<200x64xf32, #tpu.memory_space<vmem>>, vector<7x64xf32>
    %c169 = arith.constant 169 : index
    %c0_45 = arith.constant 0 : index
    %61 = tpu.strided_load %arg11[%c169, %c0_45] {strides = array<i32: 2, 1>} : memref<200x64xf32, #tpu.memory_space<vmem>>, vector<7x64xf32>
    %c182 = arith.constant 182 : index
    %c0_46 = arith.constant 0 : index
    %62 = tpu.strided_load %arg11[%c182, %c0_46] {strides = array<i32: 2, 1>} : memref<200x64xf32, #tpu.memory_space<vmem>>, vector<7x64xf32>
    %c183 = arith.constant 183 : index
    %c0_47 = arith.constant 0 : index
    %63 = tpu.strided_load %arg11[%c183, %c0_47] {strides = array<i32: 2, 1>} : memref<200x64xf32, #tpu.memory_space<vmem>>, vector<7x64xf32>
    %64 = arith.maximumf %60, %61 : vector<7x64xf32>
    %65 = arith.maximumf %62, %63 : vector<7x64xf32>
    %66 = arith.maximumf %64, %65 : vector<7x64xf32>
    %c42_48 = arith.constant 42 : index
    %c0_49 = arith.constant 0 : index
    %67 = vector.load %arg12[%c42_48, %c0_49] : memref<72x64xf32, #tpu.memory_space<vmem>>, vector<7x64xf32>
    tpu.vector_store %arg12[%c42_48, %c0_49], %66 {strides = array<i32>} : memref<72x64xf32, #tpu.memory_space<vmem>>, vector<7x64xf32>,
    %cst_50 = arith.constant 0.000000e+00 : f32
    %68 = vector.broadcast %cst_50 : f32 to vector<23x64xf32>
    %c49 = arith.constant 49 : index
    %c0_51 = arith.constant 0 : index
    %69 = vector.load %arg12[%c49, %c0_51] : memref<72x64xf32, #tpu.memory_space<vmem>>, vector<23x64xf32>
    tpu.vector_store %arg12[%c49, %c0_51], %68 {strides = array<i32>} : memref<72x64xf32, #tpu.memory_space<vmem>>, vector<23x64xf32>,
    %c0_52 = arith.constant 0 : index
    %c0_53 = arith.constant 0 : index
    %70 = vector.load %arg12[%c0_52, %c0_53] : memref<72x64xf32, #tpu.memory_space<vmem>>, vector<56x64xf32>
    %71 = arith.truncf %70 : vector<56x64xf32> to vector<56x64xbf16>
    %c1_54 = arith.constant 1 : index
    %c0_55 = arith.constant 0 : index
    %72 = vector.load %arg12[%c1_54, %c0_55] : memref<72x64xf32, #tpu.memory_space<vmem>>, vector<56x64xf32>
    %73 = arith.truncf %72 : vector<56x64xf32> to vector<56x64xbf16>
    %c2 = arith.constant 2 : index
    %c0_56 = arith.constant 0 : index
    %74 = vector.load %arg12[%c2, %c0_56] : memref<72x64xf32, #tpu.memory_space<vmem>>, vector<56x64xf32>
    %75 = arith.truncf %74 : vector<56x64xf32> to vector<56x64xbf16>
    %c7_57 = arith.constant 7 : index
    %c0_58 = arith.constant 0 : index
    %76 = vector.load %arg12[%c7_57, %c0_58] : memref<72x64xf32, #tpu.memory_space<vmem>>, vector<56x64xf32>
    %77 = arith.truncf %76 : vector<56x64xf32> to vector<56x64xbf16>
    %c8 = arith.constant 8 : index
    %c0_59 = arith.constant 0 : index
    %78 = vector.load %arg12[%c8, %c0_59] : memref<72x64xf32, #tpu.memory_space<vmem>>, vector<56x64xf32>
    %79 = arith.truncf %78 : vector<56x64xf32> to vector<56x64xbf16>
    %c9 = arith.constant 9 : index
    %c0_60 = arith.constant 0 : index
    %80 = vector.load %arg12[%c9, %c0_60] : memref<72x64xf32, #tpu.memory_space<vmem>>, vector<56x64xf32>
    %81 = arith.truncf %80 : vector<56x64xf32> to vector<56x64xbf16>
    %c14_61 = arith.constant 14 : index
    %c0_62 = arith.constant 0 : index
    %82 = vector.load %arg12[%c14_61, %c0_62] : memref<72x64xf32, #tpu.memory_space<vmem>>, vector<56x64xf32>
    %83 = arith.truncf %82 : vector<56x64xf32> to vector<56x64xbf16>
    %c15_63 = arith.constant 15 : index
    %c0_64 = arith.constant 0 : index
    %84 = vector.load %arg12[%c15_63, %c0_64] : memref<72x64xf32, #tpu.memory_space<vmem>>, vector<56x64xf32>
    %85 = arith.truncf %84 : vector<56x64xf32> to vector<56x64xbf16>
    %c16 = arith.constant 16 : index
    %c0_65 = arith.constant 0 : index
    %86 = vector.load %arg12[%c16, %c0_65] : memref<72x64xf32, #tpu.memory_space<vmem>>, vector<56x64xf32>
    %87 = arith.truncf %86 : vector<56x64xf32> to vector<56x64xbf16>
    %88 = tpu.concatenate %71, %73, %75, %77, %79, %81, %83, %85, %87 in 1 : vector<56x64xbf16>, vector<56x64xbf16>, vector<56x64xbf16>, vector<56x64xbf16>, vector<56x64xbf16>, vector<56x64xbf16>, vector<56x64xbf16>, vector<56x64xbf16>, vector<56x64xbf16> -> vector<56x576xbf16>
    %c0_66 = arith.constant 0 : index
    %c0_67 = arith.constant 0 : index
    %89 = vector.load %arg4[%c0_66, %c0_67] : memref<576x64xbf16, #tpu.memory_space<vmem>>, vector<576x64xbf16>
    %cst_68 = arith.constant dense<0.000000e+00> : vector<56x64xf32>
    %90 = tpu.matmul %88, %89, %cst_68 {dimension_numbers = #tpu.dot_dimension_numbers<[1], [0], [0], [1], [0, 0, 1, 1], [], []>} : vector<56x576xbf16>, vector<576x64xbf16>, vector<56x64xf32> -> vector<56x64xf32>
    %c0_69 = arith.constant 0 : index
    %c0_70 = arith.constant 0 : index
    %91 = vector.load %arg5[%c0_69, %c0_70] : memref<2x64xf32, #tpu.memory_space<vmem>>, vector<1x64xf32>
    %92 = vector.broadcast %91 : vector<1x64xf32> to vector<56x64xf32>
    %93 = arith.mulf %90, %92 : vector<56x64xf32>
    %c1_71 = arith.constant 1 : index
    %c0_72 = arith.constant 0 : index
    %94 = vector.load %arg5[%c1_71, %c0_72] : memref<2x64xf32, #tpu.memory_space<vmem>>, vector<1x64xf32>
    %95 = vector.broadcast %94 : vector<1x64xf32> to vector<56x64xf32>
    %96 = arith.addf %93, %95 : vector<56x64xf32>
    %cst_73 = arith.constant 0.000000e+00 : f32
    %97 = vector.broadcast %cst_73 : f32 to vector<56x64xf32>
    %98 = arith.maximumf %96, %97 : vector<56x64xf32>
    %c0_74 = arith.constant 0 : index
    %c0_75 = arith.constant 0 : index
    %99 = vector.load %arg13[%c0_74, %c0_75] : memref<56x64xf32, #tpu.memory_space<vmem>>, vector<56x64xf32>
    tpu.vector_store %arg13[%c0_74, %c0_75], %98 {strides = array<i32>} : memref<56x64xf32, #tpu.memory_space<vmem>>, vector<56x64xf32>,
    %cst_76 = arith.constant 0.000000e+00 : f32
    %100 = vector.broadcast %cst_76 : f32 to vector<32x64xf32>
    %c0_77 = arith.constant 0 : index
    %c0_78 = arith.constant 0 : index
    %101 = vector.load %arg14[%c0_77, %c0_78] : memref<32x64xf32, #tpu.memory_space<vmem>>, vector<32x64xf32>
    tpu.vector_store %arg14[%c0_77, %c0_78], %100 {strides = array<i32>} : memref<32x64xf32, #tpu.memory_space<vmem>>, vector<32x64xf32>,
    %c0_79 = arith.constant 0 : index
    %c0_80 = arith.constant 0 : index
    %102 = tpu.strided_load %arg13[%c0_79, %c0_80] {strides = array<i32: 2, 1>} : memref<56x64xf32, #tpu.memory_space<vmem>>, vector<2x64xf32>
    %c1_81 = arith.constant 1 : index
    %c0_82 = arith.constant 0 : index
    %103 = tpu.strided_load %arg13[%c1_81, %c0_82] {strides = array<i32: 2, 1>} : memref<56x64xf32, #tpu.memory_space<vmem>>, vector<2x64xf32>
    %c7_83 = arith.constant 7 : index
    %c0_84 = arith.constant 0 : index
    %104 = tpu.strided_load %arg13[%c7_83, %c0_84] {strides = array<i32: 2, 1>} : memref<56x64xf32, #tpu.memory_space<vmem>>, vector<2x64xf32>
    %c8_85 = arith.constant 8 : index
    %c0_86 = arith.constant 0 : index
    %105 = tpu.strided_load %arg13[%c8_85, %c0_86] {strides = array<i32: 2, 1>} : memref<56x64xf32, #tpu.memory_space<vmem>>, vector<2x64xf32>
    %106 = arith.maximumf %102, %103 : vector<2x64xf32>
    %107 = arith.maximumf %104, %105 : vector<2x64xf32>
    %108 = arith.maximumf %106, %107 : vector<2x64xf32>
    %c5 = arith.constant 5 : index
    %c0_87 = arith.constant 0 : index
    %109 = vector.load %arg14[%c5, %c0_87] : memref<32x64xf32, #tpu.memory_space<vmem>>, vector<2x64xf32>
    tpu.vector_store %arg14[%c5, %c0_87], %108 {strides = array<i32>} : memref<32x64xf32, #tpu.memory_space<vmem>>, vector<2x64xf32>,
    %c14_88 = arith.constant 14 : index
    %c0_89 = arith.constant 0 : index
    %110 = tpu.strided_load %arg13[%c14_88, %c0_89] {strides = array<i32: 2, 1>} : memref<56x64xf32, #tpu.memory_space<vmem>>, vector<2x64xf32>
    %c15_90 = arith.constant 15 : index
    %c0_91 = arith.constant 0 : index
    %111 = tpu.strided_load %arg13[%c15_90, %c0_91] {strides = array<i32: 2, 1>} : memref<56x64xf32, #tpu.memory_space<vmem>>, vector<2x64xf32>
    %c21_92 = arith.constant 21 : index
    %c0_93 = arith.constant 0 : index
    %112 = tpu.strided_load %arg13[%c21_92, %c0_93] {strides = array<i32: 2, 1>} : memref<56x64xf32, #tpu.memory_space<vmem>>, vector<2x64xf32>
    %c22 = arith.constant 22 : index
    %c0_94 = arith.constant 0 : index
    %113 = tpu.strided_load %arg13[%c22, %c0_94] {strides = array<i32: 2, 1>} : memref<56x64xf32, #tpu.memory_space<vmem>>, vector<2x64xf32>
    %114 = arith.maximumf %110, %111 : vector<2x64xf32>
    %115 = arith.maximumf %112, %113 : vector<2x64xf32>
    %116 = arith.maximumf %114, %115 : vector<2x64xf32>
    %c9_95 = arith.constant 9 : index
    %c0_96 = arith.constant 0 : index
    %117 = vector.load %arg14[%c9_95, %c0_96] : memref<32x64xf32, #tpu.memory_space<vmem>>, vector<2x64xf32>
    tpu.vector_store %arg14[%c9_95, %c0_96], %116 {strides = array<i32>} : memref<32x64xf32, #tpu.memory_space<vmem>>, vector<2x64xf32>,
    %c0_97 = arith.constant 0 : index
    %c0_98 = arith.constant 0 : index
    %118 = vector.load %arg14[%c0_97, %c0_98] : memref<32x64xf32, #tpu.memory_space<vmem>>, vector<16x64xf32>
    %119 = arith.truncf %118 : vector<16x64xf32> to vector<16x64xbf16>
    %c1_99 = arith.constant 1 : index
    %c0_100 = arith.constant 0 : index
    %120 = vector.load %arg14[%c1_99, %c0_100] : memref<32x64xf32, #tpu.memory_space<vmem>>, vector<16x64xf32>
    %121 = arith.truncf %120 : vector<16x64xf32> to vector<16x64xbf16>
    %c2_101 = arith.constant 2 : index
    %c0_102 = arith.constant 0 : index
    %122 = vector.load %arg14[%c2_101, %c0_102] : memref<32x64xf32, #tpu.memory_space<vmem>>, vector<16x64xf32>
    %123 = arith.truncf %122 : vector<16x64xf32> to vector<16x64xbf16>
    %c4 = arith.constant 4 : index
    %c0_103 = arith.constant 0 : index
    %124 = vector.load %arg14[%c4, %c0_103] : memref<32x64xf32, #tpu.memory_space<vmem>>, vector<16x64xf32>
    %125 = arith.truncf %124 : vector<16x64xf32> to vector<16x64xbf16>
    %c5_104 = arith.constant 5 : index
    %c0_105 = arith.constant 0 : index
    %126 = vector.load %arg14[%c5_104, %c0_105] : memref<32x64xf32, #tpu.memory_space<vmem>>, vector<16x64xf32>
    %127 = arith.truncf %126 : vector<16x64xf32> to vector<16x64xbf16>
    %c6 = arith.constant 6 : index
    %c0_106 = arith.constant 0 : index
    %128 = vector.load %arg14[%c6, %c0_106] : memref<32x64xf32, #tpu.memory_space<vmem>>, vector<16x64xf32>
    %129 = arith.truncf %128 : vector<16x64xf32> to vector<16x64xbf16>
    %c8_107 = arith.constant 8 : index
    %c0_108 = arith.constant 0 : index
    %130 = vector.load %arg14[%c8_107, %c0_108] : memref<32x64xf32, #tpu.memory_space<vmem>>, vector<16x64xf32>
    %131 = arith.truncf %130 : vector<16x64xf32> to vector<16x64xbf16>
    %c9_109 = arith.constant 9 : index
    %c0_110 = arith.constant 0 : index
    %132 = vector.load %arg14[%c9_109, %c0_110] : memref<32x64xf32, #tpu.memory_space<vmem>>, vector<16x64xf32>
    %133 = arith.truncf %132 : vector<16x64xf32> to vector<16x64xbf16>
    %c10 = arith.constant 10 : index
    %c0_111 = arith.constant 0 : index
    %134 = vector.load %arg14[%c10, %c0_111] : memref<32x64xf32, #tpu.memory_space<vmem>>, vector<16x64xf32>
    %135 = arith.truncf %134 : vector<16x64xf32> to vector<16x64xbf16>
    %136 = tpu.concatenate %119, %121, %123, %125, %127, %129, %131, %133, %135 in 1 : vector<16x64xbf16>, vector<16x64xbf16>, vector<16x64xbf16>, vector<16x64xbf16>, vector<16x64xbf16>, vector<16x64xbf16>, vector<16x64xbf16>, vector<16x64xbf16>, vector<16x64xbf16> -> vector<16x576xbf16>
    %c0_112 = arith.constant 0 : index
    %c0_113 = arith.constant 0 : index
    %137 = vector.load %arg6[%c0_112, %c0_113] : memref<576x64xbf16, #tpu.memory_space<vmem>>, vector<576x64xbf16>
    %cst_114 = arith.constant dense<0.000000e+00> : vector<16x64xf32>
    %138 = tpu.matmul %136, %137, %cst_114 {dimension_numbers = #tpu.dot_dimension_numbers<[1], [0], [0], [1], [0, 0, 1, 1], [], []>} : vector<16x576xbf16>, vector<576x64xbf16>, vector<16x64xf32> -> vector<16x64xf32>
    %c0_115 = arith.constant 0 : index
    %c0_116 = arith.constant 0 : index
    %139 = vector.load %arg7[%c0_115, %c0_116] : memref<2x64xf32, #tpu.memory_space<vmem>>, vector<1x64xf32>
    %140 = vector.broadcast %139 : vector<1x64xf32> to vector<16x64xf32>
    %141 = arith.mulf %138, %140 : vector<16x64xf32>
    %c1_117 = arith.constant 1 : index
    %c0_118 = arith.constant 0 : index
    %142 = vector.load %arg7[%c1_117, %c0_118] : memref<2x64xf32, #tpu.memory_space<vmem>>, vector<1x64xf32>
    %143 = vector.broadcast %142 : vector<1x64xf32> to vector<16x64xf32>
    %144 = arith.addf %141, %143 : vector<16x64xf32>
    %cst_119 = arith.constant 0.000000e+00 : f32
    %145 = vector.broadcast %cst_119 : f32 to vector<16x64xf32>
    %146 = arith.maximumf %144, %145 : vector<16x64xf32>
    %147 = vector.extract_strided_slice %146 {offsets = [0, 0], sizes = [2, 64], strides = [1, 1]} : vector<16x64xf32> to vector<2x64xf32>
    %c5_120 = arith.constant 5 : index
    %c0_121 = arith.constant 0 : index
    %148 = vector.load %arg14[%c5_120, %c0_121] : memref<32x64xf32, #tpu.memory_space<vmem>>, vector<2x64xf32>
    tpu.vector_store %arg14[%c5_120, %c0_121], %147 {strides = array<i32>} : memref<32x64xf32, #tpu.memory_space<vmem>>, vector<2x64xf32>,
    %149 = vector.extract_strided_slice %146 {offsets = [4, 0], sizes = [2, 64], strides = [1, 1]} : vector<16x64xf32> to vector<2x64xf32>
    %c9_122 = arith.constant 9 : index
    %c0_123 = arith.constant 0 : index
    %150 = vector.load %arg14[%c9_122, %c0_123] : memref<32x64xf32, #tpu.memory_space<vmem>>, vector<2x64xf32>
    tpu.vector_store %arg14[%c9_122, %c0_123], %149 {strides = array<i32>} : memref<32x64xf32, #tpu.memory_space<vmem>>, vector<2x64xf32>,
    %c0_124 = arith.constant 0 : index
    %c0_125 = arith.constant 0 : index
    %151 = vector.load %arg14[%c0_124, %c0_125] : memref<32x64xf32, #tpu.memory_space<vmem>>, vector<16x64xf32>
    %152 = arith.truncf %151 : vector<16x64xf32> to vector<16x64xbf16>
    %c1_126 = arith.constant 1 : index
    %c0_127 = arith.constant 0 : index
    %153 = vector.load %arg14[%c1_126, %c0_127] : memref<32x64xf32, #tpu.memory_space<vmem>>, vector<16x64xf32>
    %154 = arith.truncf %153 : vector<16x64xf32> to vector<16x64xbf16>
    %c2_128 = arith.constant 2 : index
    %c0_129 = arith.constant 0 : index
    %155 = vector.load %arg14[%c2_128, %c0_129] : memref<32x64xf32, #tpu.memory_space<vmem>>, vector<16x64xf32>
    %156 = arith.truncf %155 : vector<16x64xf32> to vector<16x64xbf16>
    %c4_130 = arith.constant 4 : index
    %c0_131 = arith.constant 0 : index
    %157 = vector.load %arg14[%c4_130, %c0_131] : memref<32x64xf32, #tpu.memory_space<vmem>>, vector<16x64xf32>
    %158 = arith.truncf %157 : vector<16x64xf32> to vector<16x64xbf16>
    %c5_132 = arith.constant 5 : index
    %c0_133 = arith.constant 0 : index
    %159 = vector.load %arg14[%c5_132, %c0_133] : memref<32x64xf32, #tpu.memory_space<vmem>>, vector<16x64xf32>
    %160 = arith.truncf %159 : vector<16x64xf32> to vector<16x64xbf16>
    %c6_134 = arith.constant 6 : index
    %c0_135 = arith.constant 0 : index
    %161 = vector.load %arg14[%c6_134, %c0_135] : memref<32x64xf32, #tpu.memory_space<vmem>>, vector<16x64xf32>
    %162 = arith.truncf %161 : vector<16x64xf32> to vector<16x64xbf16>
    %c8_136 = arith.constant 8 : index
    %c0_137 = arith.constant 0 : index
    %163 = vector.load %arg14[%c8_136, %c0_137] : memref<32x64xf32, #tpu.memory_space<vmem>>, vector<16x64xf32>
    %164 = arith.truncf %163 : vector<16x64xf32> to vector<16x64xbf16>
    %c9_138 = arith.constant 9 : index
    %c0_139 = arith.constant 0 : index
    %165 = vector.load %arg14[%c9_138, %c0_139] : memref<32x64xf32, #tpu.memory_space<vmem>>, vector<16x64xf32>
    %166 = arith.truncf %165 : vector<16x64xf32> to vector<16x64xbf16>
    %c10_140 = arith.constant 10 : index
    %c0_141 = arith.constant 0 : index
    %167 = vector.load %arg14[%c10_140, %c0_141] : memref<32x64xf32, #tpu.memory_space<vmem>>, vector<16x64xf32>
    %168 = arith.truncf %167 : vector<16x64xf32> to vector<16x64xbf16>
    %169 = tpu.concatenate %152, %154, %156, %158, %160, %162, %164, %166, %168 in 1 : vector<16x64xbf16>, vector<16x64xbf16>, vector<16x64xbf16>, vector<16x64xbf16>, vector<16x64xbf16>, vector<16x64xbf16>, vector<16x64xbf16>, vector<16x64xbf16>, vector<16x64xbf16> -> vector<16x576xbf16>
    %c0_142 = arith.constant 0 : index
    %c0_143 = arith.constant 0 : index
    %170 = vector.load %arg8[%c0_142, %c0_143] : memref<576x128xbf16, #tpu.memory_space<vmem>>, vector<576x128xbf16>
    %cst_144 = arith.constant dense<0.000000e+00> : vector<16x128xf32>
    %171 = tpu.matmul %169, %170, %cst_144 {dimension_numbers = #tpu.dot_dimension_numbers<[1], [0], [0], [1], [0, 0, 1, 1], [], []>} : vector<16x576xbf16>, vector<576x128xbf16>, vector<16x128xf32> -> vector<16x128xf32>
    %c0_145 = arith.constant 0 : index
    %c0_146 = arith.constant 0 : index
    %172 = vector.load %arg9[%c0_145, %c0_146] : memref<2x128xf32, #tpu.memory_space<vmem>>, vector<1x128xf32>
    %173 = vector.broadcast %172 : vector<1x128xf32> to vector<16x128xf32>
    %174 = arith.mulf %171, %173 : vector<16x128xf32>
    %c1_147 = arith.constant 1 : index
    %c0_148 = arith.constant 0 : index
    %175 = vector.load %arg9[%c1_147, %c0_148] : memref<2x128xf32, #tpu.memory_space<vmem>>, vector<1x128xf32>
    %176 = vector.broadcast %175 : vector<1x128xf32> to vector<16x128xf32>
    %177 = arith.addf %174, %176 : vector<16x128xf32>
    %cst_149 = arith.constant 0.000000e+00 : f32
    %178 = vector.broadcast %cst_149 : f32 to vector<16x128xf32>
    %179 = arith.maximumf %177, %178 : vector<16x128xf32>
    %180 = vector.extract_strided_slice %179 {offsets = [0, 0], sizes = [2, 128], strides = [1, 1]} : vector<16x128xf32> to vector<2x128xf32>
    %c0_150 = arith.constant 0 : index
    %c0_151 = arith.constant 0 : index
    %c0_152 = arith.constant 0 : index
    %181 = vector.load %arg10[%c0_150, %c0_151, %c0_152] : memref<1x4x128xf32, #tpu.memory_space<vmem>>, vector<1x2x128xf32>
    %182 = vector.shape_cast %181 : vector<1x2x128xf32> to vector<2x128xf32>
    %183 = vector.shape_cast %180 : vector<2x128xf32> to vector<1x2x128xf32>
    tpu.vector_store %arg10[%c0_150, %c0_151, %c0_152], %183 {strides = array<i32>} : memref<1x4x128xf32, #tpu.memory_space<vmem>>, vector<1x2x128xf32>,
    %184 = vector.extract_strided_slice %179 {offsets = [4, 0], sizes = [2, 128], strides = [1, 1]} : vector<16x128xf32> to vector<2x128xf32>
    %c0_153 = arith.constant 0 : index
    %c2_154 = arith.constant 2 : index
    %c0_155 = arith.constant 0 : index
    %185 = vector.load %arg10[%c0_153, %c2_154, %c0_155] : memref<1x4x128xf32, #tpu.memory_space<vmem>>, vector<1x2x128xf32>
    %186 = vector.shape_cast %185 : vector<1x2x128xf32> to vector<2x128xf32>
    %187 = vector.shape_cast %184 : vector<2x128xf32> to vector<1x2x128xf32>
    tpu.vector_store %arg10[%c0_153, %c2_154, %c0_155], %187 {strides = array<i32>} : memref<1x4x128xf32, #tpu.memory_space<vmem>>, vector<1x2x128xf32>,
    return
  }
  func.func @transform_0(%arg0: i32) -> (i32, i32) {
    %c0_i32 = arith.constant 0 : i32
    %c0_i32_0 = arith.constant 0 : i32
    return %arg0, %c0_i32 : i32, i32
  }
  func.func @transform_1(%arg0: i32) -> (i32, i32) {
    %c0_i32 = arith.constant 0 : i32
    %c0_i32_0 = arith.constant 0 : i32
    %c0_i32_1 = arith.constant 0 : i32
    return %c0_i32, %c0_i32_0 : i32, i32
  }
  func.func @transform_2(%arg0: i32) -> (i32, i32) {
    %c0_i32 = arith.constant 0 : i32
    %c0_i32_0 = arith.constant 0 : i32
    %c0_i32_1 = arith.constant 0 : i32
    return %c0_i32, %c0_i32_0 : i32, i32
  }
  func.func @transform_3(%arg0: i32) -> (i32, i32) {
    %c0_i32 = arith.constant 0 : i32
    %c0_i32_0 = arith.constant 0 : i32
    %c0_i32_1 = arith.constant 0 : i32
    return %c0_i32, %c0_i32_0 : i32, i32
  }
  func.func @transform_4(%arg0: i32) -> (i32, i32) {
    %c0_i32 = arith.constant 0 : i32
    %c0_i32_0 = arith.constant 0 : i32
    %c0_i32_1 = arith.constant 0 : i32
    return %c0_i32, %c0_i32_0 : i32, i32
  }
  func.func @transform_5(%arg0: i32) -> (i32, i32) {
    %c0_i32 = arith.constant 0 : i32
    %c0_i32_0 = arith.constant 0 : i32
    %c0_i32_1 = arith.constant 0 : i32
    return %c0_i32, %c0_i32_0 : i32, i32
  }
  func.func @transform_6(%arg0: i32) -> (i32, i32) {
    %c0_i32 = arith.constant 0 : i32
    %c0_i32_0 = arith.constant 0 : i32
    %c0_i32_1 = arith.constant 0 : i32
    return %c0_i32, %c0_i32_0 : i32, i32
  }
  func.func @transform_7(%arg0: i32) -> (i32, i32) {
    %c0_i32 = arith.constant 0 : i32
    %c0_i32_0 = arith.constant 0 : i32
    %c0_i32_1 = arith.constant 0 : i32
    return %c0_i32, %c0_i32_0 : i32, i32
  }
  func.func @transform_8(%arg0: i32) -> (i32, i32) {
    %c0_i32 = arith.constant 0 : i32
    %c0_i32_0 = arith.constant 0 : i32
    %c0_i32_1 = arith.constant 0 : i32
    return %c0_i32, %c0_i32_0 : i32, i32
  }
  func.func @transform_9(%arg0: i32) -> (i32, i32, i32) {
    %c0_i32 = arith.constant 0 : i32
    %c0_i32_0 = arith.constant 0 : i32
    %c0_i32_1 = arith.constant 0 : i32
    return %arg0, %c0_i32, %c0_i32_0 : i32, i32, i32
  }
}

</mosaic_0001>

<llo_original>
// kernel: cnn_encoder_forward.1
$region0: #{cnn_encoder_forward.1}
  #allocation0 [shape = 'u32[]', space=smem, size = 0x4, offset = 0x4, fixed_abs, tag = 'smem constant byte address 0x4 - core index']
  #allocation1 [shape = 'u32[72,128]{1,0:T(1,128)}', space=vmem, size = 0x9000, scoped, tag = 'internal scratch']
  #allocation2 [shape = 'f32[200,64]{1,0:T(8,128)}', space=vmem, size = 0x19000, scoped, tag = 'scratch operand']
  #allocation3 [shape = 'f32[72,64]{1,0:T(8,128)}', space=vmem, size = 0x9000, scoped, tag = 'scratch operand']
  #allocation4 [shape = 'f32[56,64]{1,0:T(8,128)}', space=vmem, size = 0x7000, scoped, tag = 'scratch operand']
  #allocation5 [shape = 'f32[32,64]{1,0:T(8,128)}', space=vmem, size = 0x4000, scoped, tag = 'scratch operand']
  %s0 = inlined_call_operand.vmem [shape: bf16[400,32], index: 0, kind: input, shape index: {}]
  %s1 = inlined_call_operand.vmem [shape: bf16[32,64], index: 1, kind: input, shape index: {}]
  %s2 = inlined_call_operand.vmem [shape: f32[2,64], index: 2, kind: input, shape index: {}]
  %s3 = inlined_call_operand.vmem [shape: bf16[576,64], index: 3, kind: input, shape index: {}]
  %s4 = inlined_call_operand.vmem [shape: f32[2,64], index: 4, kind: input, shape index: {}]
  %s5 = inlined_call_operand.vmem [shape: bf16[576,64], index: 5, kind: input, shape index: {}]
  %s6 = inlined_call_operand.vmem [shape: f32[2,64], index: 6, kind: input, shape index: {}]
  %s7 = inlined_call_operand.vmem [shape: bf16[576,128], index: 7, kind: input, shape index: {}]
  %s8 = inlined_call_operand.vmem [shape: f32[2,128], index: 8, kind: input, shape index: {}]
  %s9 = inlined_call_operand.vmem [shape: f32[2,4,128], index: 9, kind: output, shape index: {}]
  %s10 = sld [smem:[#allocation0]]
  $region69: #{cnn_encoder_forward.1} parent=0
    _
  %s12 = ssub.s32 1, %s10
  %s13 = scalar_select 0, %s12, %s10
  loop: start=0, step=1, limit=4
  $region2: #{cnn_encoder_forward.1} parent=0 // loop_pre_header
    _
  $region3: #{cnn_encoder_forward.1} parent=0 // loop_header
    %s15 = sphi 0, %s19
    %p16 = scmp.ge.s32.totalorder %s15, 4
    %s25 = sphi 0, %s27
    %s28 = sphi 0, %s25
    %s29 = sphi 0, %s28
    %s45 = sphi 0, %s29
    %s49 = sphi 0, %s49
    %s51 = sphi 0, %s49
    %s52 = sphi 0, %s51
    %s66 = sphi 0, %s52
    %s70 = sphi 0, %s70
    %s72 = sphi 0, %s70
    %s73 = sphi 0, %s72
    %s87 = sphi 0, %s73
    %s91 = sphi 0, %s91
    %s93 = sphi 0, %s91
    %s94 = sphi 0, %s93
    %s108 = sphi 0, %s94
    %s112 = sphi 0, %s112
    %s114 = sphi 0, %s112
    %s115 = sphi 0, %s114
    %s129 = sphi 0, %s115
    %s133 = sphi 0, %s133
    %s135 = sphi 0, %s133
    %s136 = sphi 0, %s135
    %s150 = sphi 0, %s136
    %s154 = sphi 0, %s154
    %s156 = sphi 0, %s154
    %s157 = sphi 0, %s156
    %s171 = sphi 0, %s157
    %s175 = sphi 0, %s175
    %s177 = sphi 0, %s175
    %s178 = sphi 0, %s177
    %s192 = sphi 0, %s178
    %s196 = sphi 0, %s196
    %s198 = sphi 0, %s196
    %s199 = sphi 0, %s198
    %s213 = sphi 0, %s199
    %s219 = sphi 0, %s221
    %s222 = sphi 0, %s219
    %s223 = sphi 0, %s222
    %s239 = sphi 0, %s223
  $region4: #{cnn_encoder_forward.1} parent=0 // loop_header_branch
    %18 = sbr.rel (%p16) target = $region8
  $region5: #{cnn_encoder_forward.1} parent=0 // loop_body
    %s20 = ssub.s32 %s15, 1
    %s21 = ssub.s32 %s15, 2
    %s22 = sadd.s32 %s15, 1
    %s23 = ssub.s32 %s15, %s22
    %p24 = scmp.eq.s32.totalorder %s23, 0
    %s26 = sadd.s32 %s25, 1
    %s27 = scalar_select %p24, %s25, %s26
    %p30 = pneg %p24
    %p31 = scmp.eq.s32.totalorder %s15, 1
    %p32 = por %p30, %p31
    %p33 = scmp.ne.s32.totalorder %s25, %s28
    %p34 = scmp.eq.s32.totalorder %s15, 0
    %p35 = por %p33, %p34
    %p36 = scmp.ne.s32.totalorder %s25, %s28
    %p37 = scmp.eq.s32.totalorder %s20, 1
    %p38 = por %p36, %p37
    %p39 = scmp.ne.s32.totalorder %s28, %s29
    %p40 = scmp.eq.s32.totalorder %s20, 0
    %p41 = por %p39, %p40
    %p42 = scmp.ne.s32.totalorder %s28, %s29
    %p43 = scmp.eq.s32.totalorder %s21, 1
    %p44 = por %p42, %p43
    %p46 = scmp.ne.s32.totalorder %s29, %s45
    %p47 = scmp.eq.s32.totalorder %s21, 0
    %p48 = por %p46, %p47
    %s50 = sadd.s32 %s49, 1
    %p53 = scmp.eq.s32.totalorder %s15, 1
    %p54 = scmp.ne.s32.totalorder %s49, %s51
    %p55 = scmp.eq.s32.totalorder %s15, 0
    %p56 = por %p54, %p55
    %p57 = scmp.ne.s32.totalorder %s49, %s51
    %p58 = scmp.eq.s32.totalorder %s20, 1
    %p59 = por %p57, %p58
    %p60 = scmp.ne.s32.totalorder %s51, %s52
    %p61 = scmp.eq.s32.totalorder %s20, 0
    %p62 = por %p60, %p61
    %p63 = scmp.ne.s32.totalorder %s51, %s52
    %p64 = scmp.eq.s32.totalorder %s21, 1
    %p65 = por %p63, %p64
    %p67 = scmp.ne.s32.totalorder %s52, %s66
    %p68 = scmp.eq.s32.totalorder %s21, 0
    %p69 = por %p67, %p68
    %s71 = sadd.s32 %s70, 1
    %p74 = scmp.eq.s32.totalorder %s15, 1
    %p75 = scmp.ne.s32.totalorder %s70, %s72
    %p76 = scmp.eq.s32.totalorder %s15, 0
    %p77 = por %p75, %p76
    %p78 = scmp.ne.s32.totalorder %s70, %s72
    %p79 = scmp.eq.s32.totalorder %s20, 1
    %p80 = por %p78, %p79
    %p81 = scmp.ne.s32.totalorder %s72, %s73
    %p82 = scmp.eq.s32.totalorder %s20, 0
    %p83 = por %p81, %p82
    %p84 = scmp.ne.s32.totalorder %s72, %s73
    %p85 = scmp.eq.s32.totalorder %s21, 1
    %p86 = por %p84, %p85
    %p88 = scmp.ne.s32.totalorder %s73, %s87
    %p89 = scmp.eq.s32.totalorder %s21, 0
    %p90 = por %p88, %p89
    %s92 = sadd.s32 %s91, 1
    %p95 = scmp.eq.s32.totalorder %s15, 1
    %p96 = scmp.ne.s32.totalorder %s91, %s93
    %p97 = scmp.eq.s32.totalorder %s15, 0
    %p98 = por %p96, %p97
    %p99 = scmp.ne.s32.totalorder %s91, %s93
    %p100 = scmp.eq.s32.totalorder %s20, 1
    %p101 = por %p99, %p100
    %p102 = scmp.ne.s32.totalorder %s93, %s94
    %p103 = scmp.eq.s32.totalorder %s20, 0
    %p104 = por %p102, %p103
    %p105 = scmp.ne.s32.totalorder %s93, %s94
    %p106 = scmp.eq.s32.totalorder %s21, 1
    %p107 = por %p105, %p106
    %p109 = scmp.ne.s32.totalorder %s94, %s108
    %p110 = scmp.eq.s32.totalorder %s21, 0
    %p111 = por %p109, %p110
    %s113 = sadd.s32 %s112, 1
    %p116 = scmp.eq.s32.totalorder %s15, 1
    %p117 = scmp.ne.s32.totalorder %s112, %s114
    %p118 = scmp.eq.s32.totalorder %s15, 0
    %p119 = por %p117, %p118
    %p120 = scmp.ne.s32.totalorder %s112, %s114
    %p121 = scmp.eq.s32.totalorder %s20, 1
    %p122 = por %p120, %p121
    %p123 = scmp.ne.s32.totalorder %s114, %s115
    %p124 = scmp.eq.s32.totalorder %s20, 0
    %p125 = por %p123, %p124
    %p126 = scmp.ne.s32.totalorder %s114, %s115
    %p127 = scmp.eq.s32.totalorder %s21, 1
    %p128 = por %p126, %p127
    %p130 = scmp.ne.s32.totalorder %s115, %s129
    %p131 = scmp.eq.s32.totalorder %s21, 0
    %p132 = por %p130, %p131
    %s134 = sadd.s32 %s133, 1
    %p137 = scmp.eq.s32.totalorder %s15, 1
    %p138 = scmp.ne.s32.totalorder %s133, %s135
    %p139 = scmp.eq.s32.totalorder %s15, 0
    %p140 = por %p138, %p139
    %p141 = scmp.ne.s32.totalorder %s133, %s135
    %p142 = scmp.eq.s32.totalorder %s20, 1
    %p143 = por %p141, %p142
    %p144 = scmp.ne.s32.totalorder %s135, %s136
    %p145 = scmp.eq.s32.totalorder %s20, 0
    %p146 = por %p144, %p145
    %p147 = scmp.ne.s32.totalorder %s135, %s136
    %p148 = scmp.eq.s32.totalorder %s21, 1
    %p149 = por %p147, %p148
    %p151 = scmp.ne.s32.totalorder %s136, %s150
    %p152 = scmp.eq.s32.totalorder %s21, 0
    %p153 = por %p151, %p152
    %s155 = sadd.s32 %s154, 1
    %p158 = scmp.eq.s32.totalorder %s15, 1
    %p159 = scmp.ne.s32.totalorder %s154, %s156
    %p160 = scmp.eq.s32.totalorder %s15, 0
    %p161 = por %p159, %p160
    %p162 = scmp.ne.s32.totalorder %s154, %s156
    %p163 = scmp.eq.s32.totalorder %s20, 1
    %p164 = por %p162, %p163
    %p165 = scmp.ne.s32.totalorder %s156, %s157
    %p166 = scmp.eq.s32.totalorder %s20, 0
    %p167 = por %p165, %p166
    %p168 = scmp.ne.s32.totalorder %s156, %s157
    %p169 = scmp.eq.s32.totalorder %s21, 1
    %p170 = por %p168, %p169
    %p172 = scmp.ne.s32.totalorder %s157, %s171
    %p173 = scmp.eq.s32.totalorder %s21, 0
    %p174 = por %p172, %p173
    %s176 = sadd.s32 %s175, 1
    %p179 = scmp.eq.s32.totalorder %s15, 1
    %p180 = scmp.ne.s32.totalorder %s175, %s177
    %p181 = scmp.eq.s32.totalorder %s15, 0
    %p182 = por %p180, %p181
    %p183 = scmp.ne.s32.totalorder %s175, %s177
    %p184 = scmp.eq.s32.totalorder %s20, 1
    %p185 = por %p183, %p184
    %p186 = scmp.ne.s32.totalorder %s177, %s178
    %p187 = scmp.eq.s32.totalorder %s20, 0
    %p188 = por %p186, %p187
    %p189 = scmp.ne.s32.totalorder %s177, %s178
    %p190 = scmp.eq.s32.totalorder %s21, 1
    %p191 = por %p189, %p190
    %p193 = scmp.ne.s32.totalorder %s178, %s192
    %p194 = scmp.eq.s32.totalorder %s21, 0
    %p195 = por %p193, %p194
    %s197 = sadd.s32 %s196, 1
    %p200 = scmp.eq.s32.totalorder %s15, 1
    %p201 = scmp.ne.s32.totalorder %s196, %s198
    %p202 = scmp.eq.s32.totalorder %s15, 0
    %p203 = por %p201, %p202
    %p204 = scmp.ne.s32.totalorder %s196, %s198
    %p205 = scmp.eq.s32.totalorder %s20, 1
    %p206 = por %p204, %p205
    %p207 = scmp.ne.s32.totalorder %s198, %s199
    %p208 = scmp.eq.s32.totalorder %s20, 0
    %p209 = por %p207, %p208
    %p210 = scmp.ne.s32.totalorder %s198, %s199
    %p211 = scmp.eq.s32.totalorder %s21, 1
    %p212 = por %p210, %p211
    %p214 = scmp.ne.s32.totalorder %s199, %s213
    %p215 = scmp.eq.s32.totalorder %s21, 0
    %p216 = por %p214, %p215
    %s217 = ssub.s32 %s15, %s22
    %p218 = scmp.eq.s32.totalorder %s217, 0
    %s220 = sadd.s32 %s219, 1
    %s221 = scalar_select %p218, %s219, %s220
    %p224 = pneg %p218
    %p225 = scmp.eq.s32.totalorder %s15, 1
    %p226 = por %p224, %p225
    %p227 = scmp.ne.s32.totalorder %s219, %s222
    %p228 = scmp.eq.s32.totalorder %s15, 0
    %p229 = por %p227, %p228
    %p230 = scmp.ne.s32.totalorder %s219, %s222
    %p231 = scmp.eq.s32.totalorder %s20, 1
    %p232 = por %p230, %p231
    %p233 = scmp.ne.s32.totalorder %s222, %s223
    %p234 = scmp.eq.s32.totalorder %s20, 0
    %p235 = por %p233, %p234
    %p236 = scmp.ne.s32.totalorder %s222, %s223
    %p237 = scmp.eq.s32.totalorder %s21, 1
    %p238 = por %p236, %p237
    %p240 = scmp.ne.s32.totalorder %s223, %s239
    %p241 = scmp.eq.s32.totalorder %s21, 0
    %p242 = por %p240, %p241
    %p243 = scmp.le.s32.totalorder 1, %s15
    %p244 = scmp.lt.s32.totalorder %s15, 3
    %p245 = pnand %p243, %p244
    %p246 = pneg %p245
    // Predicated region
    $region9: #{cnn_encoder_forward.1} parent=5 // pred_check
      _
    $region10: #{cnn_encoder_forward.1} parent=5 // pred_check_branch
      %248 = sbr.rel (%p245) target = $region12
    $region11: #{cnn_encoder_forward.1} parent=5 // pred_region
      %s249 = ssub.s32 %s15, 1
      // Predicated region
      $region13: #{cnn_encoder_forward.1} parent=11 // pred_check
        %p250 = pneg %p62
      $region14: #{cnn_encoder_forward.1} parent=11 // pred_check_branch
        %252 = sbr.rel (%p250) target = $region16
      $region15: #{cnn_encoder_forward.1} parent=11 // pred_region
        _
      $region16: #{cnn_encoder_forward.1} parent=11 // pred_fallthru
        _
      // Predicated region
      $region17: #{cnn_encoder_forward.1} parent=11 // pred_check
        %p253 = pneg %p83
      $region18: #{cnn_encoder_forward.1} parent=11 // pred_check_branch
        %255 = sbr.rel (%p253) target = $region20
      $region19: #{cnn_encoder_forward.1} parent=11 // pred_region
        _
      $region20: #{cnn_encoder_forward.1} parent=11 // pred_fallthru
        _
      // Predicated region
      $region21: #{cnn_encoder_forward.1} parent=11 // pred_check
        %p256 = pneg %p104
      $region22: #{cnn_encoder_forward.1} parent=11 // pred_check_branch
        %258 = sbr.rel (%p256) target = $region24
      $region23: #{cnn_encoder_forward.1} parent=11 // pred_region
        _
      $region24: #{cnn_encoder_forward.1} parent=11 // pred_fallthru
        _
      // Predicated region
      $region25: #{cnn_encoder_forward.1} parent=11 // pred_check
        %p259 = pneg %p125
      $region26: #{cnn_encoder_forward.1} parent=11 // pred_check_branch
        %261 = sbr.rel (%p259) target = $region28
      $region27: #{cnn_encoder_forward.1} parent=11 // pred_region
        _
      $region28: #{cnn_encoder_forward.1} parent=11 // pred_fallthru
        _
      // Predicated region
      $region29: #{cnn_encoder_forward.1} parent=11 // pred_check
        %p262 = pneg %p146
      $region30: #{cnn_encoder_forward.1} parent=11 // pred_check_branch
        %264 = sbr.rel (%p262) target = $region32
      $region31: #{cnn_encoder_forward.1} parent=11 // pred_region
        _
      $region32: #{cnn_encoder_forward.1} parent=11 // pred_fallthru
        _
      // Predicated region
      $region33: #{cnn_encoder_forward.1} parent=11 // pred_check
        %p265 = pneg %p167
      $region34: #{cnn_encoder_forward.1} parent=11 // pred_check_branch
        %267 = sbr.rel (%p265) target = $region36
      $region35: #{cnn_encoder_forward.1} parent=11 // pred_region
        _
      $region36: #{cnn_encoder_forward.1} parent=11 // pred_fallthru
        _
      // Predicated region
      $region37: #{cnn_encoder_forward.1} parent=11 // pred_check
        %p268 = pneg %p188
      $region38: #{cnn_encoder_forward.1} parent=11 // pred_check_branch
        %270 = sbr.rel (%p268) target = $region40
      $region39: #{cnn_encoder_forward.1} parent=11 // pred_region
        _
      $region40: #{cnn_encoder_forward.1} parent=11 // pred_fallthru
        _
      // Predicated region
      $region41: #{cnn_encoder_forward.1} parent=11 // pred_check
        %p271 = pneg %p209
      $region42: #{cnn_encoder_forward.1} parent=11 // pred_check_branch
        %273 = sbr.rel (%p271) target = $region44
      $region43: #{cnn_encoder_forward.1} parent=11 // pred_region
        _
      $region44: #{cnn_encoder_forward.1} parent=11 // pred_fallthru
        _
    $region12: #{cnn_encoder_forward.1} parent=5 // pred_fallthru
      _
    %p274 = scmp.lt.s32.totalorder %s15, 2
    // Predicated region
    $region45: #{cnn_encoder_forward.1} parent=5 // pred_check
      %p275 = pneg %p274
    $region46: #{cnn_encoder_forward.1} parent=5 // pred_check_branch
      %277 = sbr.rel (%p275) target = $region48
    $region47: #{cnn_encoder_forward.1} parent=5 // pred_region
      // Predicated region
      $region49: #{cnn_encoder_forward.1} parent=47 // pred_check
        %p278 = pneg %p35
      $region50: #{cnn_encoder_forward.1} parent=47 // pred_check_branch
        %280 = sbr.rel (%p278) target = $region52
      $region51: #{cnn_encoder_forward.1} parent=47 // pred_region
        %s281 = smul.u32 25, %s15
        %p282 = scmp.lt.s32.totalorder %s281, 49
        %s283 = scalar_select %p282, %s281, 49
        %s284 = smul.addr %s283, 4
        %s285 = scalar_lea.vmem %s0, %s284
        %s286 = smul.u32 25, %s15
      $region52: #{cnn_encoder_forward.1} parent=47 // pred_fallthru
        _
    $region48: #{cnn_encoder_forward.1} parent=5 // pred_fallthru
      _
    %p287 = scmp.le.s32.totalorder 1, %s15
    %p288 = scmp.lt.s32.totalorder %s15, 3
    %p289 = pnand %p287, %p288
    %p290 = pneg %p289
    // Predicated region
    $region53: #{cnn_encoder_forward.1} parent=5 // pred_check
      _
    $region54: #{cnn_encoder_forward.1} parent=5 // pred_check_branch
      %292 = sbr.rel (%p289) target = $region56
    $region55: #{cnn_encoder_forward.1} parent=5 // pred_region
      %s293 = ssub.s32 %s15, 1
      %s294 = smul.u32 25, %s20
      %p295 = scmp.lt.s32.totalorder %s294, 49
      %s296 = scalar_select %p295, %s294, 49
      %s297 = smul.addr %s296, 4
      %s298 = scalar_lea.vmem %s0, %s297
      %p299 = pneg %p41
      %p300 = pneg %p38
      %p301 = pneg %p62
      %p302 = pneg %p59
      %p303 = pneg %p83
      %p304 = pneg %p80
      %p305 = pneg %p104
      %p306 = pneg %p101
      %p307 = pneg %p125
      %p308 = pneg %p122
      %p309 = pneg %p146
      %p310 = pneg %p143
      %p311 = pneg %p167
      %p312 = pneg %p164
      %p313 = pneg %p188
      %p314 = pneg %p185
      %p315 = pneg %p209
      %p316 = pneg %p206
      %p317 = pneg %p235
      %p318 = pneg %p232
      %p319 = scmp.lt.s32.totalorder %s20, 1
      %s320 = scalar_select %p319, %s20, 1
      %s321 = smul.addr %s320, 4
      %s322 = scalar_lea.vmem %s9, %s321
      %s323 = smul.u32 25, %s20
      %p324 = scmp.lt.s32.totalorder %s323, 49
      %s325 = scalar_select %p324, %s323, 49
      %s326 = smul.addr %s325, 4
      %s327 = scalar_lea.vmem %s0, %s326
      %s328 = smul.u32 25, %s20
      %p329 = scmp.lt.s32.totalorder %s20, 1
      %s330 = scalar_select %p329, %s20, 1
      %s331 = smul.addr %s330, 4
      %s332 = scalar_lea.vmem %s9, %s331
      %v334 = vld [vmem:[%s327] sm:$0xf]
      %v335 = vld [vmem:[%s327 + $0x4] sm:$0xf]
      %v336 = vld [vmem:[%s327 + $0x8] sm:$0xf]
      %v337 = vld [vmem:[%s327 + $0xc] sm:$0xf]
      %v338 = vld [vmem:[%s327 + $0x10] sm:$0xf]
      %v339 = vld [vmem:[%s327 + $0x14] sm:$0xf]
      %v340 = vld [vmem:[%s327 + $0x18] sm:$0xf]
      %v341 = vld [vmem:[%s327 + $0x1c] sm:$0xf]
      %v342 = vld [vmem:[%s327 + $0x20] sm:$0xf]
      %v343 = vld [vmem:[%s327 + $0x24] sm:$0xf]
      %v344 = vld [vmem:[%s327 + $0x28] sm:$0xf]
      %v345 = vld [vmem:[%s327 + $0x2c] sm:$0xf]
      %v346 = vld [vmem:[%s327 + $0x30] sm:$0xf]
      %v347 = vld [vmem:[%s327 + $0x34] sm:$0xf]
      %v348 = vld [vmem:[%s327 + $0x38] sm:$0xf]
      %v349 = vld [vmem:[%s327 + $0x3c] sm:$0xf]
      %v350 = vld [vmem:[%s327 + $0x40] sm:$0xf]
      %v351 = vld [vmem:[%s327 + $0x44] sm:$0xf]
      %v352 = vld [vmem:[%s327 + $0x48] sm:$0xf]
      %v353 = vld [vmem:[%s327 + $0x4c] sm:$0xf]
      %v354 = vld [vmem:[%s327 + $0x50] sm:$0xf]
      %v355 = vld [vmem:[%s327 + $0x54] sm:$0xf]
      %v356 = vld [vmem:[%s327 + $0x58] sm:$0xf]
      %v357 = vld [vmem:[%s327 + $0x5c] sm:$0xf]
      %v358 = vld [vmem:[%s327 + $0x60] sm:$0xf]
      %v359 = vld [vmem:[%s1] sm:$0xf]
      %v360 = vld [vmem:[%s1 + $0x4] sm:$0xf]
      %v361 = vld [vmem:[%s1 + $0x8] sm:$0xf]
      %v362 = vld [vmem:[%s1 + $0xc] sm:$0xf]
      %v388 = vunpack.c.l.b16 %v334
      %v389 = vunpack.c.l.b16 %v335
      %v390 = vunpack.c.l.b16 %v336
      %v391 = vunpack.c.l.b16 %v337
      %v392 = vunpack.c.l.b16 %v338
      %v393 = vunpack.c.l.b16 %v339
      %v394 = vunpack.c.l.b16 %v340
      %v395 = vunpack.c.l.b16 %v341
      %v396 = vunpack.c.l.b16 %v342
      %v397 = vunpack.c.l.b16 %v343
      %v398 = vunpack.c.l.b16 %v344
      %v399 = vunpack.c.l.b16 %v345
      %v400 = vunpack.c.l.b16 %v346
      %v401 = vunpack.c.l.b16 %v347
      %v402 = vunpack.c.l.b16 %v348
      %v403 = vunpack.c.l.b16 %v349
      %v404 = vunpack.c.l.b16 %v350
      %v405 = vunpack.c.l.b16 %v351
      %v406 = vunpack.c.l.b16 %v352
      %v407 = vunpack.c.l.b16 %v353
      %v408 = vunpack.c.l.b16 %v354
      %v409 = vunpack.c.l.b16 %v355
      %v410 = vunpack.c.l.b16 %v356
      %v411 = vunpack.c.l.b16 %v357
      %v412 = vunpack.c.l.b16 %v358
      %v413 = vpack.c.b16 %v389, %v388
      %v414 = vpack.c.b16 %v391, %v390
      %v415 = vpack.c.b16 %v393, %v392
      %v416 = vpack.c.b16 %v395, %v394
      %v417 = vpack.c.b16 %v397, %v396
      %v418 = vpack.c.b16 %v399, %v398
      %v419 = vpack.c.b16 %v401, %v400
      %v420 = vpack.c.b16 %v403, %v402
      %v421 = vpack.c.b16 %v405, %v404
      %v422 = vpack.c.b16 %v407, %v406
      %v423 = vpack.c.b16 %v409, %v408
      %v424 = vpack.c.b16 %v411, %v410
      %v425 = vpack.c.b16 %v412, %v412
      %v430 = vunpack.c.l.b16 %v359
      %v431 = vunpack.c.l.b16 %v360
      %v432 = vunpack.c.l.b16 %v361
      %v433 = vunpack.c.l.b16 %v362
      %v434 = vpack.c.b16 %v431, %v430
      %v435 = vpack.c.b16 %v433, %v432
      %vm438 = vcmask 261120
      %v440 = vsel %vm438, %v413, 0
      %v443 = vsel %vm438, %v414, 0
      %v446 = vsel %vm438, %v415, 0
      %v449 = vsel %vm438, %v416, 0
      %v452 = vsel %vm438, %v417, 0
      %v455 = vsel %vm438, %v418, 0
      %v458 = vsel %vm438, %v419, 0
      %v461 = vsel %vm438, %v420, 0
      %v464 = vsel %vm438, %v421, 0
      %v467 = vsel %vm438, %v422, 0
      %v470 = vsel %vm438, %v423, 0
      %v473 = vsel %vm438, %v424, 0
      %v476 = vsel %vm438, %v425, 0
      %478 = vmatpush.bf16.msra.mxu0 0
      %479 = vmatpush.bf16.msra.mxu0 0
      %480 = vmatpush.bf16.msra.mxu0 0
      %481 = vmatpush.bf16.msra.mxu0 0
      %482 = vmatpush.bf16.msra.mxu0 0
      %483 = vmatpush.bf16.msra.mxu0 0
      %484 = vmatpush.bf16.msra.mxu0 %v435
      %485 = vmatpush.bf16.msra.mxu0 %v434
      %486 = vmatmul.bf16.gmra.mxu0 %v440
      %v487 = vpop.f32.mrf.mxu0
      %v488 = vadd.f32 0.0, %v487
      %v489 = vpop.f32.mrf.mxu0
      %v490 = vadd.f32 0.0, %v489
      %491 = vmatmul.bf16.gmra.mxu0 %v443
      %v492 = vpop.f32.mrf.mxu0
      %v493 = vadd.f32 0.0, %v492
      %v494 = vpop.f32.mrf.mxu0
      %v495 = vadd.f32 0.0, %v494
      %496 = vmatmul.bf16.gmra.mxu0 %v446
      %v497 = vpop.f32.mrf.mxu0
      %v498 = vadd.f32 0.0, %v497
      %v499 = vpop.f32.mrf.mxu0
      %v500 = vadd.f32 0.0, %v499
      %501 = vmatmul.bf16.gmra.mxu0 %v449
      %v502 = vpop.f32.mrf.mxu0
      %v503 = vadd.f32 0.0, %v502
      %v504 = vpop.f32.mrf.mxu0
      %v505 = vadd.f32 0.0, %v504
      %506 = vmatmul.bf16.gmra.mxu0 %v452
      %v507 = vpop.f32.mrf.mxu0
      %v508 = vadd.f32 0.0, %v507
      %v509 = vpop.f32.mrf.mxu0
      %v510 = vadd.f32 0.0, %v509
      %511 = vmatmul.bf16.gmra.mxu0 %v455
      %v512 = vpop.f32.mrf.mxu0
      %v513 = vadd.f32 0.0, %v512
      %v514 = vpop.f32.mrf.mxu0
      %v515 = vadd.f32 0.0, %v514
      %516 = vmatmul.bf16.gmra.mxu0 %v458
      %v517 = vpop.f32.mrf.mxu0
      %v518 = vadd.f32 0.0, %v517
      %v519 = vpop.f32.mrf.mxu0
      %v520 = vadd.f32 0.0, %v519
      %521 = vmatmul.bf16.gmra.mxu0 %v461
      %v522 = vpop.f32.mrf.mxu0
      %v523 = vadd.f32 0.0, %v522
      %v524 = vpop.f32.mrf.mxu0
      %v525 = vadd.f32 0.0, %v524
      %526 = vmatmul.bf16.gmra.mxu0 %v464
      %v527 = vpop.f32.mrf.mxu0
      %v528 = vadd.f32 0.0, %v527
      %v529 = vpop.f32.mrf.mxu0
      %v530 = vadd.f32 0.0, %v529
      %531 = vmatmul.bf16.gmra.mxu0 %v467
      %v532 = vpop.f32.mrf.mxu0
      %v533 = vadd.f32 0.0, %v532
      %v534 = vpop.f32.mrf.mxu0
      %v535 = vadd.f32 0.0, %v534
      %536 = vmatmul.bf16.gmra.mxu0 %v470
      %v537 = vpop.f32.mrf.mxu0
      %v538 = vadd.f32 0.0, %v537
      %v539 = vpop.f32.mrf.mxu0
      %v540 = vadd.f32 0.0, %v539
      %541 = vmatmul.bf16.gmra.mxu0 %v473
      %v542 = vpop.f32.mrf.mxu0
      %v543 = vadd.f32 0.0, %v542
      %v544 = vpop.f32.mrf.mxu0
      %v545 = vadd.f32 0.0, %v544
      %546 = vmatmul.bf16.gmra.mxu0 %v476
      %v547 = vpop.f32.mrf.mxu0
      %v548 = vadd.f32 0.0, %v547
      %v549 = vpop.f32.mrf.mxu0
      %550 = vdwg.mxu0
      %v551 = vld [vmem:[%s2] sm:$0x1]
      %v552 = vperm.slane %v551, 0
      %v553 = vmul.f32 %v488, %v552
      %v554 = vmul.f32 %v490, %v552
      %v555 = vmul.f32 %v493, %v552
      %v556 = vmul.f32 %v495, %v552
      %v557 = vmul.f32 %v498, %v552
      %v558 = vmul.f32 %v500, %v552
      %v559 = vmul.f32 %v503, %v552
      %v560 = vmul.f32 %v505, %v552
      %v561 = vmul.f32 %v508, %v552
      %v562 = vmul.f32 %v510, %v552
      %v563 = vmul.f32 %v513, %v552
      %v564 = vmul.f32 %v515, %v552
      %v565 = vmul.f32 %v518, %v552
      %v566 = vmul.f32 %v520, %v552
      %v567 = vmul.f32 %v523, %v552
      %v568 = vmul.f32 %v525, %v552
      %v569 = vmul.f32 %v528, %v552
      %v570 = vmul.f32 %v530, %v552
      %v571 = vmul.f32 %v533, %v552
      %v572 = vmul.f32 %v535, %v552
      %v573 = vmul.f32 %v538, %v552
      %v574 = vmul.f32 %v540, %v552
      %v575 = vmul.f32 %v543, %v552
      %v576 = vmul.f32 %v545, %v552
      %v577 = vmul.f32 %v548, %v552
      %v578 = vld [vmem:[%s2 + $0x1] sm:$0x1]
      %v579 = vperm.slane %v578, 0
      %v580 = vadd.f32 %v553, %v579
      %v581 = vadd.f32 %v554, %v579
      %v582 = vadd.f32 %v555, %v579
      %v583 = vadd.f32 %v556, %v579
      %v584 = vadd.f32 %v557, %v579
      %v585 = vadd.f32 %v558, %v579
      %v586 = vadd.f32 %v559, %v579
      %v587 = vadd.f32 %v560, %v579
      %v588 = vadd.f32 %v561, %v579
      %v589 = vadd.f32 %v562, %v579
      %v590 = vadd.f32 %v563, %v579
      %v591 = vadd.f32 %v564, %v579
      %v592 = vadd.f32 %v565, %v579
      %v593 = vadd.f32 %v566, %v579
      %v594 = vadd.f32 %v567, %v579
      %v595 = vadd.f32 %v568, %v579
      %v596 = vadd.f32 %v569, %v579
      %v597 = vadd.f32 %v570, %v579
      %v598 = vadd.f32 %v571, %v579
      %v599 = vadd.f32 %v572, %v579
      %v600 = vadd.f32 %v573, %v579
      %v601 = vadd.f32 %v574, %v579
      %v602 = vadd.f32 %v575, %v579
      %v603 = vadd.f32 %v576, %v579
      %v604 = vadd.f32 %v577, %v579
      %v605 = vmax.f32 %v580, 0.0
      %v606 = vmax.f32 %v581, 0.0
      %v607 = vmax.f32 %v582, 0.0
      %v608 = vmax.f32 %v583, 0.0
      %v609 = vmax.f32 %v584, 0.0
      %v610 = vmax.f32 %v585, 0.0
      %v611 = vmax.f32 %v586, 0.0
      %v612 = vmax.f32 %v587, 0.0
      %v613 = vmax.f32 %v588, 0.0
      %v614 = vmax.f32 %v589, 0.0
      %v615 = vmax.f32 %v590, 0.0
      %v616 = vmax.f32 %v591, 0.0
      %v617 = vmax.f32 %v592, 0.0
      %v618 = vmax.f32 %v593, 0.0
      %v619 = vmax.f32 %v594, 0.0
      %v620 = vmax.f32 %v595, 0.0
      %v621 = vmax.f32 %v596, 0.0
      %v622 = vmax.f32 %v597, 0.0
      %v623 = vmax.f32 %v598, 0.0
      %v624 = vmax.f32 %v599, 0.0
      %v625 = vmax.f32 %v600, 0.0
      %v626 = vmax.f32 %v601, 0.0
      %v627 = vmax.f32 %v602, 0.0
      %v628 = vmax.f32 %v603, 0.0
      %v629 = vmax.f32 %v604, 0.0
      %vm630 = vcmask 523264
      %631 = vst.msk [vmem:[#allocation2] sm:$0xff] %vm630, %v605
      %632 = vst.msk [vmem:[#allocation2 + $0x8] sm:$0xff] %vm630, %v606
      %633 = vst.msk [vmem:[#allocation2 + $0x10] sm:$0xff] %vm630, %v607
      %634 = vst.msk [vmem:[#allocation2 + $0x18] sm:$0xff] %vm630, %v608
      %635 = vst.msk [vmem:[#allocation2 + $0x20] sm:$0xff] %vm630, %v609
      %636 = vst.msk [vmem:[#allocation2 + $0x28] sm:$0xff] %vm630, %v610
      %637 = vst.msk [vmem:[#allocation2 + $0x30] sm:$0xff] %vm630, %v611
      %638 = vst.msk [vmem:[#allocation2 + $0x38] sm:$0xff] %vm630, %v612
      %639 = vst.msk [vmem:[#allocation2 + $0x40] sm:$0xff] %vm630, %v613
      %640 = vst.msk [vmem:[#allocation2 + $0x48] sm:$0xff] %vm630, %v614
      %641 = vst.msk [vmem:[#allocation2 + $0x50] sm:$0xff] %vm630, %v615
      %642 = vst.msk [vmem:[#allocation2 + $0x58] sm:$0xff] %vm630, %v616
      %643 = vst.msk [vmem:[#allocation2 + $0x60] sm:$0xff] %vm630, %v617
      %644 = vst.msk [vmem:[#allocation2 + $0x68] sm:$0xff] %vm630, %v618
      %645 = vst.msk [vmem:[#allocation2 + $0x70] sm:$0xff] %vm630, %v619
      %646 = vst.msk [vmem:[#allocation2 + $0x78] sm:$0xff] %vm630, %v620
      %647 = vst.msk [vmem:[#allocation2 + $0x80] sm:$0xff] %vm630, %v621
      %648 = vst.msk [vmem:[#allocation2 + $0x88] sm:$0xff] %vm630, %v622
      %649 = vst.msk [vmem:[#allocation2 + $0x90] sm:$0xff] %vm630, %v623
      %650 = vst.msk [vmem:[#allocation2 + $0x98] sm:$0xff] %vm630, %v624
      %651 = vst.msk [vmem:[#allocation2 + $0xa0] sm:$0xff] %vm630, %v625
      %652 = vst.msk [vmem:[#allocation2 + $0xa8] sm:$0xff] %vm630, %v626
      %653 = vst.msk [vmem:[#allocation2 + $0xb0] sm:$0xff] %vm630, %v627
      %654 = vst.msk [vmem:[#allocation2 + $0xb8] sm:$0xff] %vm630, %v628
      %655 = vst.msk [vmem:[#allocation2 + $0xc0] sm:$0xff] %vm630, %v629
      %v656 = vld [vmem:[#allocation2] ss:$2 sm:$0x7f]
      %s657 = scalar_lea.vmem [#allocation2], 1
      %v658 = vld [vmem:[%s657] ss:$2 sm:$0x7f]
      %s659 = scalar_lea.vmem [#allocation2], 14
      %v660 = vld [vmem:[%s659] ss:$2 sm:$0x7f]
      %s661 = scalar_lea.vmem [#allocation2], 15
      %v662 = vld [vmem:[%s661] ss:$2 sm:$0x7f]
      %v663 = vmax.f32 %v656, %v658
      %v664 = vmax.f32 %v660, %v662
      %v665 = vmax.f32 %v663, %v664
      %vm666 = vcmask 522240
      %667 = vst.msk [vmem:[#allocation3] sm:$0x7f] %vm666, %v665
      %s668 = scalar_lea.vmem [#allocation2], 28
      %v669 = vld [vmem:[%s668] ss:$2 sm:$0x7f]
      %s670 = scalar_lea.vmem [#allocation2], 29
      %v671 = vld [vmem:[%s670] ss:$2 sm:$0x7f]
      %s672 = scalar_lea.vmem [#allocation2], 42
      %v673 = vld [vmem:[%s672] ss:$2 sm:$0x7f]
      %s674 = scalar_lea.vmem [#allocation2], 43
      %v675 = vld [vmem:[%s674] ss:$2 sm:$0x7f]
      %v676 = vmax.f32 %v669, %v671
      %v677 = vmax.f32 %v673, %v675
      %v678 = vmax.f32 %v676, %v677
      %679 = vst.msk [vmem:[#allocation3 + $0x7] sm:$0x7f] %vm666, %v678
      %s680 = scalar_lea.vmem [#allocation2], 56
      %v681 = vld [vmem:[%s680] ss:$2 sm:$0x7f]
      %s682 = scalar_lea.vmem [#allocation2], 57
      %v683 = vld [vmem:[%s682] ss:$2 sm:$0x7f]
      %s684 = scalar_lea.vmem [#allocation2], 70
      %v685 = vld [vmem:[%s684] ss:$2 sm:$0x7f]
      %s686 = scalar_lea.vmem [#allocation2], 71
      %v687 = vld [vmem:[%s686] ss:$2 sm:$0x7f]
      %v688 = vmax.f32 %v681, %v683
      %v689 = vmax.f32 %v685, %v687
      %v690 = vmax.f32 %v688, %v689
      %691 = vst.msk [vmem:[#allocation3 + $0xe] sm:$0x7f] %vm666, %v690
      %s692 = scalar_lea.vmem [#allocation2], 84
      %v693 = vld [vmem:[%s692] ss:$2 sm:$0x7f]
      %s694 = scalar_lea.vmem [#allocation2], 85
      %v695 = vld [vmem:[%s694] ss:$2 sm:$0x7f]
      %s696 = scalar_lea.vmem [#allocation2], 98
      %v697 = vld [vmem:[%s696] ss:$2 sm:$0x7f]
      %s698 = scalar_lea.vmem [#allocation2], 99
      %v699 = vld [vmem:[%s698] ss:$2 sm:$0x7f]
      %v700 = vmax.f32 %v693, %v695
      %v701 = vmax.f32 %v697, %v699
      %v702 = vmax.f32 %v700, %v701
      %703 = vst.msk [vmem:[#allocation3 + $0x15] sm:$0x7f] %vm666, %v702
      %s704 = scalar_lea.vmem [#allocation2], 112
      %v705 = vld [vmem:[%s704] ss:$2 sm:$0x7f]
      %s706 = scalar_lea.vmem [#allocation2], 113
      %v707 = vld [vmem:[%s706] ss:$2 sm:$0x7f]
      %s708 = scalar_lea.vmem [#allocation2], 126
      %v709 = vld [vmem:[%s708] ss:$2 sm:$0x7f]
      %s710 = scalar_lea.vmem [#allocation2], 127
      %v711 = vld [vmem:[%s710] ss:$2 sm:$0x7f]
      %v712 = vmax.f32 %v705, %v707
      %v713 = vmax.f32 %v709, %v711
      %v714 = vmax.f32 %v712, %v713
      %715 = vst.msk [vmem:[#allocation3 + $0x1c] sm:$0x7f] %vm666, %v714
      %s716 = scalar_lea.vmem [#allocation2], 140
      %v717 = vld [vmem:[%s716] ss:$2 sm:$0x7f]
      %s718 = scalar_lea.vmem [#allocation2], 141
      %v719 = vld [vmem:[%s718] ss:$2 sm:$0x7f]
      %s720 = scalar_lea.vmem [#allocation2], 154
      %v721 = vld [vmem:[%s720] ss:$2 sm:$0x7f]
      %s722 = scalar_lea.vmem [#allocation2], 155
      %v723 = vld [vmem:[%s722] ss:$2 sm:$0x7f]
      %v724 = vmax.f32 %v717, %v719
      %v725 = vmax.f32 %v721, %v723
      %v726 = vmax.f32 %v724, %v725
      %727 = vst.msk [vmem:[#allocation3 + $0x23] sm:$0x7f] %vm666, %v726
      %s728 = scalar_lea.vmem [#allocation2], 168
      %v729 = vld [vmem:[%s728] ss:$2 sm:$0x7f]
      %s730 = scalar_lea.vmem [#allocation2], 169
      %v731 = vld [vmem:[%s730] ss:$2 sm:$0x7f]
      %s732 = scalar_lea.vmem [#allocation2], 182
      %v733 = vld [vmem:[%s732] ss:$2 sm:$0x7f]
      %s734 = scalar_lea.vmem [#allocation2], 183
      %v735 = vld [vmem:[%s734] ss:$2 sm:$0x7f]
      %v736 = vmax.f32 %v729, %v731
      %v737 = vmax.f32 %v733, %v735
      %v738 = vmax.f32 %v736, %v737
      %739 = vst.msk [vmem:[#allocation3 + $0x2a] sm:$0x7f] %vm666, %v738
      %740 = vst.msk [vmem:[#allocation3 + $0x31] sm:$0xff] %vm630, 0.0
      %741 = vst.msk [vmem:[#allocation3 + $0x39] sm:$0xff] %vm630, 0.0
      %742 = vst.msk [vmem:[#allocation3 + $0x41] sm:$0x7f] %vm666, 0.0
      %v743 = vld [vmem:[#allocation3] sm:$0xff]
      %v744 = vld [vmem:[#allocation3 + $0x8] sm:$0xff]
      %v745 = vld [vmem:[#allocation3 + $0x10] sm:$0xff]
      %v746 = vld [vmem:[#allocation3 + $0x18] sm:$0xff]
      %v747 = vld [vmem:[#allocation3 + $0x20] sm:$0xff]
      %v748 = vld [vmem:[#allocation3 + $0x28] sm:$0xff]
      %v749 = vld [vmem:[#allocation3 + $0x30] sm:$0xff]
      %v750 = vpack.c.bf16 %v743, %v743
      %v751 = vpack.c.bf16 %v744, %v744
      %v752 = vpack.c.bf16 %v745, %v745
      %v753 = vpack.c.bf16 %v746, %v746
      %v754 = vpack.c.bf16 %v747, %v747
      %v755 = vpack.c.bf16 %v748, %v748
      %v756 = vpack.c.bf16 %v749, %v749
      %v757 = vld [vmem:[#allocation3 + $0x1] sm:$0xff]
      %v758 = vld [vmem:[#allocation3 + $0x9] sm:$0xff]
      %v759 = vld [vmem:[#allocation3 + $0x11] sm:$0xff]
      %v760 = vld [vmem:[#allocation3 + $0x19] sm:$0xff]
      %v761 = vld [vmem:[#allocation3 + $0x21] sm:$0xff]
      %v762 = vld [vmem:[#allocation3 + $0x29] sm:$0xff]
      %v763 = vld [vmem:[#allocation3 + $0x31] sm:$0xff]
      %v764 = vpack.c.bf16 %v757, %v757
      %v765 = vpack.c.bf16 %v758, %v758
      %v766 = vpack.c.bf16 %v759, %v759
      %v767 = vpack.c.bf16 %v760, %v760
      %v768 = vpack.c.bf16 %v761, %v761
      %v769 = vpack.c.bf16 %v762, %v762
      %v770 = vpack.c.bf16 %v763, %v763
      %v771 = vld [vmem:[#allocation3 + $0x2] sm:$0xff]
      %v772 = vld [vmem:[#allocation3 + $0xa] sm:$0xff]
      %v773 = vld [vmem:[#allocation3 + $0x12] sm:$0xff]
      %v774 = vld [vmem:[#allocation3 + $0x1a] sm:$0xff]
      %v775 = vld [vmem:[#allocation3 + $0x22] sm:$0xff]
      %v776 = vld [vmem:[#allocation3 + $0x2a] sm:$0xff]
      %v777 = vld [vmem:[#allocation3 + $0x32] sm:$0xff]
      %v778 = vpack.c.bf16 %v771, %v771
      %v779 = vpack.c.bf16 %v772, %v772
      %v780 = vpack.c.bf16 %v773, %v773
      %v781 = vpack.c.bf16 %v774, %v774
      %v782 = vpack.c.bf16 %v775, %v775
      %v783 = vpack.c.bf16 %v776, %v776
      %v784 = vpack.c.bf16 %v777, %v777
      %v785 = vld [vmem:[#allocation3 + $0x7] sm:$0xff]
      %v786 = vld [vmem:[#allocation3 + $0xf] sm:$0xff]
      %v787 = vld [vmem:[#allocation3 + $0x17] sm:$0xff]
      %v788 = vld [vmem:[#allocation3 + $0x1f] sm:$0xff]
      %v789 = vld [vmem:[#allocation3 + $0x27] sm:$0xff]
      %v790 = vld [vmem:[#allocation3 + $0x2f] sm:$0xff]
      %v791 = vld [vmem:[#allocation3 + $0x37] sm:$0xff]
      %v792 = vpack.c.bf16 %v785, %v785
      %v793 = vpack.c.bf16 %v786, %v786
      %v794 = vpack.c.bf16 %v787, %v787
      %v795 = vpack.c.bf16 %v788, %v788
      %v796 = vpack.c.bf16 %v789, %v789
      %v797 = vpack.c.bf16 %v790, %v790
      %v798 = vpack.c.bf16 %v791, %v791
      %v799 = vld [vmem:[#allocation3 + $0x38] sm:$0xff]
      %v800 = vpack.c.bf16 %v799, %v799
      %v801 = vld [vmem:[#allocation3 + $0x39] sm:$0xff]
      %v802 = vpack.c.bf16 %v801, %v801
      %v803 = vld [vmem:[#allocation3 + $0xe] sm:$0xff]
      %v804 = vld [vmem:[#allocation3 + $0x16] sm:$0xff]
      %v805 = vld [vmem:[#allocation3 + $0x1e] sm:$0xff]
      %v806 = vld [vmem:[#allocation3 + $0x26] sm:$0xff]
      %v807 = vld [vmem:[#allocation3 + $0x2e] sm:$0xff]
      %v808 = vld [vmem:[#allocation3 + $0x36] sm:$0xff]
      %v809 = vld [vmem:[#allocation3 + $0x3e] sm:$0xff]
      %v810 = vpack.c.bf16 %v803, %v803
      %v811 = vpack.c.bf16 %v804, %v804
      %v812 = vpack.c.bf16 %v805, %v805
      %v813 = vpack.c.bf16 %v806, %v806
      %v814 = vpack.c.bf16 %v807, %v807
      %v815 = vpack.c.bf16 %v808, %v808
      %v816 = vpack.c.bf16 %v809, %v809
      %v817 = vld [vmem:[#allocation3 + $0x3f] sm:$0xff]
      %v818 = vpack.c.bf16 %v817, %v817
      %v819 = vld [vmem:[#allocation3 + $0x40] sm:$0xff]
      %v820 = vpack.c.bf16 %v819, %v819
      %v828 = vunpack.c.l.b16 %v750
      %v829 = vunpack.c.l.b16 %v751
      %v830 = vunpack.c.l.b16 %v752
      %v831 = vunpack.c.l.b16 %v753
      %v832 = vunpack.c.l.b16 %v754
      %v833 = vunpack.c.l.b16 %v755
      %v834 = vunpack.c.l.b16 %v756
      %v835 = vpack.c.b16 %v829, %v828
      %v836 = vpack.c.b16 %v831, %v830
      %v837 = vpack.c.b16 %v833, %v832
      %v838 = vpack.c.b16 %v834, %v834
      %v846 = vunpack.c.l.b16 %v764
      %v847 = vunpack.c.l.b16 %v765
      %v848 = vunpack.c.l.b16 %v766
      %v849 = vunpack.c.l.b16 %v767
      %v850 = vunpack.c.l.b16 %v768
      %v851 = vunpack.c.l.b16 %v769
      %v852 = vunpack.c.l.b16 %v770
      %v853 = vpack.c.b16 %v847, %v846
      %v854 = vpack.c.b16 %v849, %v848
      %v855 = vpack.c.b16 %v851, %v850
      %v856 = vpack.c.b16 %v852, %v852
      %857 = vrot.lane.b32.xlu0 %v853, 64
      %v858 = vpop.permute.xlu0 %857
      %859 = vrot.lane.b32.xlu0 %v854, 64
      %v860 = vpop.permute.xlu0 %859
      %861 = vrot.lane.b32.xlu0 %v855, 64
      %v862 = vpop.permute.xlu0 %861
      %863 = vrot.lane.b32.xlu0 %v856, 64
      %v864 = vpop.permute.xlu0 %863
      %v872 = vunpack.c.l.b16 %v778
      %v873 = vunpack.c.l.b16 %v779
      %v874 = vunpack.c.l.b16 %v780
      %v875 = vunpack.c.l.b16 %v781
      %v876 = vunpack.c.l.b16 %v782
      %v877 = vunpack.c.l.b16 %v783
      %v878 = vunpack.c.l.b16 %v784
      %v879 = vpack.c.b16 %v873, %v872
      %v880 = vpack.c.b16 %v875, %v874
      %v881 = vpack.c.b16 %v877, %v876
      %v882 = vpack.c.b16 %v878, %v878
      %v890 = vunpack.c.l.b16 %v792
      %v891 = vunpack.c.l.b16 %v793
      %v892 = vunpack.c.l.b16 %v794
      %v893 = vunpack.c.l.b16 %v795
      %v894 = vunpack.c.l.b16 %v796
      %v895 = vunpack.c.l.b16 %v797
      %v896 = vunpack.c.l.b16 %v798
      %v897 = vpack.c.b16 %v891, %v890
      %v898 = vpack.c.b16 %v893, %v892
      %v899 = vpack.c.b16 %v895, %v894
      %v900 = vpack.c.b16 %v896, %v896
      %901 = vrot.lane.b32.xlu0 %v897, 64
      %v902 = vpop.permute.xlu0 %901
      %903 = vrot.lane.b32.xlu0 %v898, 64
      %v904 = vpop.permute.xlu0 %903
      %905 = vrot.lane.b32.xlu0 %v899, 64
      %v906 = vpop.permute.xlu0 %905
      %907 = vrot.lane.b32.xlu0 %v900, 64
      %v908 = vpop.permute.xlu0 %907
      %v910 = vunpack.c.l.b16 %v800
      %v911 = vpack.c.b16 %v830, %v829
      %v912 = vpack.c.b16 %v832, %v831
      %v913 = vpack.c.b16 %v834, %v833
      %v914 = vpack.c.b16 %v910, %v910
      %v916 = vunpack.c.l.b16 %v802
      %v917 = vpack.c.b16 %v848, %v847
      %v918 = vpack.c.b16 %v850, %v849
      %v919 = vpack.c.b16 %v852, %v851
      %v920 = vpack.c.b16 %v916, %v916
      %921 = vrot.lane.b32.xlu0 %v917, 64
      %v922 = vpop.permute.xlu0 %921
      %923 = vrot.lane.b32.xlu0 %v918, 64
      %v924 = vpop.permute.xlu0 %923
      %925 = vrot.lane.b32.xlu0 %v919, 64
      %v926 = vpop.permute.xlu0 %925
      %927 = vrot.lane.b32.xlu0 %v920, 64
      %v928 = vpop.permute.xlu0 %927
      %v936 = vunpack.c.l.b16 %v810
      %v937 = vunpack.c.l.b16 %v811
      %v938 = vunpack.c.l.b16 %v812
      %v939 = vunpack.c.l.b16 %v813
      %v940 = vunpack.c.l.b16 %v814
      %v941 = vunpack.c.l.b16 %v815
      %v942 = vunpack.c.l.b16 %v816
      %v943 = vpack.c.b16 %v937, %v936
      %v944 = vpack.c.b16 %v939, %v938
      %v945 = vpack.c.b16 %v941, %v940
      %v946 = vpack.c.b16 %v942, %v942
      %v948 = vunpack.c.l.b16 %v818
      %v949 = vpack.c.b16 %v892, %v891
      %v950 = vpack.c.b16 %v894, %v893
      %v951 = vpack.c.b16 %v896, %v895
      %v952 = vpack.c.b16 %v948, %v948
      %953 = vrot.lane.b32.xlu0 %v949, 64
      %v954 = vpop.permute.xlu0 %953
      %955 = vrot.lane.b32.xlu0 %v950, 64
      %v956 = vpop.permute.xlu0 %955
      %957 = vrot.lane.b32.xlu0 %v951, 64
      %v958 = vpop.permute.xlu0 %957
      %959 = vrot.lane.b32.xlu0 %v952, 64
      %v960 = vpop.permute.xlu0 %959
      %v962 = vunpack.c.l.b16 %v820
      %v963 = vpack.c.b16 %v910, %v834
      %v964 = vpack.c.b16 %v962, %v962
      %v967 = vsel %vm630, %v835, %v858
      %v971 = vsel %vm630, %v836, %v860
      %v975 = vsel %vm630, %v837, %v862
      %v979 = vsel %vm630, %v838, %v864
      %v983 = vsel %vm630, %v879, %v902
      %v987 = vsel %vm630, %v880, %v904
      %v991 = vsel %vm630, %v881, %v906
      %v995 = vsel %vm630, %v882, %v908
      %v999 = vsel %vm630, %v911, %v922
      %v1003 = vsel %vm630, %v912, %v924
      %v1007 = vsel %vm630, %v913, %v926
      %v1011 = vsel %vm630, %v914, %v928
      %v1015 = vsel %vm630, %v943, %v954
      %v1019 = vsel %vm630, %v944, %v956
      %v1023 = vsel %vm630, %v945, %v958
      %v1027 = vsel %vm630, %v946, %v960
      %v1029 = vld [vmem:[%s3] sm:$0xf]
      %v1030 = vld [vmem:[%s3 + $0x4] sm:$0xf]
      %v1031 = vld [vmem:[%s3 + $0x8] sm:$0xf]
      %v1032 = vld [vmem:[%s3 + $0xc] sm:$0xf]
      %v1033 = vld [vmem:[%s3 + $0x10] sm:$0xf]
      %v1034 = vld [vmem:[%s3 + $0x14] sm:$0xf]
      %v1035 = vld [vmem:[%s3 + $0x18] sm:$0xf]
      %v1036 = vld [vmem:[%s3 + $0x1c] sm:$0xf]
      %v1037 = vld [vmem:[%s3 + $0x20] sm:$0xf]
      %v1038 = vld [vmem:[%s3 + $0x24] sm:$0xf]
      %v1039 = vld [vmem:[%s3 + $0x28] sm:$0xf]
      %v1040 = vld [vmem:[%s3 + $0x2c] sm:$0xf]
      %v1041 = vld [vmem:[%s3 + $0x30] sm:$0xf]
      %v1042 = vld [vmem:[%s3 + $0x34] sm:$0xf]
      %v1043 = vld [vmem:[%s3 + $0x38] sm:$0xf]
      %v1044 = vld [vmem:[%s3 + $0x3c] sm:$0xf]
      %v1045 = vld [vmem:[%s3 + $0x40] sm:$0xf]
      %v1046 = vld [vmem:[%s3 + $0x44] sm:$0xf]
      %v1047 = vld [vmem:[%s3 + $0x48] sm:$0xf]
      %v1048 = vld [vmem:[%s3 + $0x4c] sm:$0xf]
      %v1049 = vld [vmem:[%s3 + $0x50] sm:$0xf]
      %v1050 = vld [vmem:[%s3 + $0x54] sm:$0xf]
      %v1051 = vld [vmem:[%s3 + $0x58] sm:$0xf]
      %v1052 = vld [vmem:[%s3 + $0x5c] sm:$0xf]
      %v1053 = vld [vmem:[%s3 + $0x60] sm:$0xf]
      %v1054 = vld [vmem:[%s3 + $0x64] sm:$0xf]
      %v1055 = vld [vmem:[%s3 + $0x68] sm:$0xf]
      %v1056 = vld [vmem:[%s3 + $0x6c] sm:$0xf]
      %v1057 = vld [vmem:[%s3 + $0x70] sm:$0xf]
      %v1058 = vld [vmem:[%s3 + $0x74] sm:$0xf]
      %v1059 = vld [vmem:[%s3 + $0x78] sm:$0xf]
      %v1060 = vld [vmem:[%s3 + $0x7c] sm:$0xf]
      %v1061 = vld [vmem:[%s3 + $0x80] sm:$0xf]
      %v1062 = vld [vmem:[%s3 + $0x84] sm:$0xf]
      %v1063 = vld [vmem:[%s3 + $0x88] sm:$0xf]
      %v1064 = vld [vmem:[%s3 + $0x8c] sm:$0xf]
      %v1065 = vld [vmem:[%s3 + $0x90] sm:$0xf]
      %v1066 = vld [vmem:[%s3 + $0x94] sm:$0xf]
      %v1067 = vld [vmem:[%s3 + $0x98] sm:$0xf]
      %v1068 = vld [vmem:[%s3 + $0x9c] sm:$0xf]
      %v1069 = vld [vmem:[%s3 + $0xa0] sm:$0xf]
      %v1070 = vld [vmem:[%s3 + $0xa4] sm:$0xf]
      %v1071 = vld [vmem:[%s3 + $0xa8] sm:$0xf]
      %v1072 = vld [vmem:[%s3 + $0xac] sm:$0xf]
      %v1073 = vld [vmem:[%s3 + $0xb0] sm:$0xf]
      %v1074 = vld [vmem:[%s3 + $0xb4] sm:$0xf]
      %v1075 = vld [vmem:[%s3 + $0xb8] sm:$0xf]
      %v1076 = vld [vmem:[%s3 + $0xbc] sm:$0xf]
      %v1077 = vld [vmem:[%s3 + $0xc0] sm:$0xf]
      %v1078 = vld [vmem:[%s3 + $0xc4] sm:$0xf]
      %v1079 = vld [vmem:[%s3 + $0xc8] sm:$0xf]
      %v1080 = vld [vmem:[%s3 + $0xcc] sm:$0xf]
      %v1081 = vld [vmem:[%s3 + $0xd0] sm:$0xf]
      %v1082 = vld [vmem:[%s3 + $0xd4] sm:$0xf]
      %v1083 = vld [vmem:[%s3 + $0xd8] sm:$0xf]
      %v1084 = vld [vmem:[%s3 + $0xdc] sm:$0xf]
      %v1085 = vld [vmem:[%s3 + $0xe0] sm:$0xf]
      %v1086 = vld [vmem:[%s3 + $0xe4] sm:$0xf]
      %v1087 = vld [vmem:[%s3 + $0xe8] sm:$0xf]
      %v1088 = vld [vmem:[%s3 + $0xec] sm:$0xf]
      %v1089 = vld [vmem:[%s3 + $0xf0] sm:$0xf]
      %v1090 = vld [vmem:[%s3 + $0xf4] sm:$0xf]
      %v1091 = vld [vmem:[%s3 + $0xf8] sm:$0xf]
      %v1092 = vld [vmem:[%s3 + $0xfc] sm:$0xf]
      %v1093 = vld [vmem:[%s3 + $0x100] sm:$0xf]
      %v1094 = vld [vmem:[%s3 + $0x104] sm:$0xf]
      %v1095 = vld [vmem:[%s3 + $0x108] sm:$0xf]
      %v1096 = vld [vmem:[%s3 + $0x10c] sm:$0xf]
      %v1097 = vld [vmem:[%s3 + $0x110] sm:$0xf]
      %v1098 = vld [vmem:[%s3 + $0x114] sm:$0xf]
      %v1099 = vld [vmem:[%s3 + $0x118] sm:$0xf]
      %v1100 = vld [vmem:[%s3 + $0x11c] sm:$0xf]
      %v1173 = vunpack.c.l.b16 %v1029
      %v1174 = vunpack.c.l.b16 %v1030
      %v1175 = vunpack.c.l.b16 %v1031
      %v1176 = vunpack.c.l.b16 %v1032
      %v1177 = vunpack.c.l.b16 %v1033
      %v1178 = vunpack.c.l.b16 %v1034
      %v1179 = vunpack.c.l.b16 %v1035
      %v1180 = vunpack.c.l.b16 %v1036
      %v1181 = vunpack.c.l.b16 %v1037
      %v1182 = vunpack.c.l.b16 %v1038
      %v1183 = vunpack.c.l.b16 %v1039
      %v1184 = vunpack.c.l.b16 %v1040
      %v1185 = vunpack.c.l.b16 %v1041
      %v1186 = vunpack.c.l.b16 %v1042
      %v1187 = vunpack.c.l.b16 %v1043
      %v1188 = vunpack.c.l.b16 %v1044
      %v1189 = vunpack.c.l.b16 %v1045
      %v1190 = vunpack.c.l.b16 %v1046
      %v1191 = vunpack.c.l.b16 %v1047
      %v1192 = vunpack.c.l.b16 %v1048
      %v1193 = vunpack.c.l.b16 %v1049
      %v1194 = vunpack.c.l.b16 %v1050
      %v1195 = vunpack.c.l.b16 %v1051
      %v1196 = vunpack.c.l.b16 %v1052
      %v1197 = vunpack.c.l.b16 %v1053
      %v1198 = vunpack.c.l.b16 %v1054
      %v1199 = vunpack.c.l.b16 %v1055
      %v1200 = vunpack.c.l.b16 %v1056
      %v1201 = vunpack.c.l.b16 %v1057
      %v1202 = vunpack.c.l.b16 %v1058
      %v1203 = vunpack.c.l.b16 %v1059
      %v1204 = vunpack.c.l.b16 %v1060
      %v1205 = vunpack.c.l.b16 %v1061
      %v1206 = vunpack.c.l.b16 %v1062
      %v1207 = vunpack.c.l.b16 %v1063
      %v1208 = vunpack.c.l.b16 %v1064
      %v1209 = vunpack.c.l.b16 %v1065
      %v1210 = vunpack.c.l.b16 %v1066
      %v1211 = vunpack.c.l.b16 %v1067
      %v1212 = vunpack.c.l.b16 %v1068
      %v1213 = vunpack.c.l.b16 %v1069
      %v1214 = vunpack.c.l.b16 %v1070
      %v1215 = vunpack.c.l.b16 %v1071
      %v1216 = vunpack.c.l.b16 %v1072
      %v1217 = vunpack.c.l.b16 %v1073
      %v1218 = vunpack.c.l.b16 %v1074
      %v1219 = vunpack.c.l.b16 %v1075
      %v1220 = vunpack.c.l.b16 %v1076
      %v1221 = vunpack.c.l.b16 %v1077
      %v1222 = vunpack.c.l.b16 %v1078
      %v1223 = vunpack.c.l.b16 %v1079
      %v1224 = vunpack.c.l.b16 %v1080
      %v1225 = vunpack.c.l.b16 %v1081
      %v1226 = vunpack.c.l.b16 %v1082
      %v1227 = vunpack.c.l.b16 %v1083
      %v1228 = vunpack.c.l.b16 %v1084
      %v1229 = vunpack.c.l.b16 %v1085
      %v1230 = vunpack.c.l.b16 %v1086
      %v1231 = vunpack.c.l.b16 %v1087
      %v1232 = vunpack.c.l.b16 %v1088
      %v1233 = vunpack.c.l.b16 %v1089
      %v1234 = vunpack.c.l.b16 %v1090
      %v1235 = vunpack.c.l.b16 %v1091
      %v1236 = vunpack.c.l.b16 %v1092
      %v1237 = vunpack.c.l.b16 %v1093
      %v1238 = vunpack.c.l.b16 %v1094
      %v1239 = vunpack.c.l.b16 %v1095
      %v1240 = vunpack.c.l.b16 %v1096
      %v1241 = vunpack.c.l.b16 %v1097
      %v1242 = vunpack.c.l.b16 %v1098
      %v1243 = vunpack.c.l.b16 %v1099
      %v1244 = vunpack.c.l.b16 %v1100
      %v1245 = vpack.c.b16 %v1174, %v1173
      %v1246 = vpack.c.b16 %v1176, %v1175
      %v1247 = vpack.c.b16 %v1178, %v1177
      %v1248 = vpack.c.b16 %v1180, %v1179
      %v1249 = vpack.c.b16 %v1182, %v1181
      %v1250 = vpack.c.b16 %v1184, %v1183
      %v1251 = vpack.c.b16 %v1186, %v1185
      %v1252 = vpack.c.b16 %v1188, %v1187
      %v1253 = vpack.c.b16 %v1190, %v1189
      %v1254 = vpack.c.b16 %v1192, %v1191
      %v1255 = vpack.c.b16 %v1194, %v1193
      %v1256 = vpack.c.b16 %v1196, %v1195
      %v1257 = vpack.c.b16 %v1198, %v1197
      %v1258 = vpack.c.b16 %v1200, %v1199
      %v1259 = vpack.c.b16 %v1202, %v1201
      %v1260 = vpack.c.b16 %v1204, %v1203
      %v1261 = vpack.c.b16 %v1206, %v1205
      %v1262 = vpack.c.b16 %v1208, %v1207
      %v1263 = vpack.c.b16 %v1210, %v1209
      %v1264 = vpack.c.b16 %v1212, %v1211
      %v1265 = vpack.c.b16 %v1214, %v1213
      %v1266 = vpack.c.b16 %v1216, %v1215
      %v1267 = vpack.c.b16 %v1218, %v1217
      %v1268 = vpack.c.b16 %v1220, %v1219
      %v1269 = vpack.c.b16 %v1222, %v1221
      %v1270 = vpack.c.b16 %v1224, %v1223
      %v1271 = vpack.c.b16 %v1226, %v1225
      %v1272 = vpack.c.b16 %v1228, %v1227
      %v1273 = vpack.c.b16 %v1230, %v1229
      %v1274 = vpack.c.b16 %v1232, %v1231
      %v1275 = vpack.c.b16 %v1234, %v1233
      %v1276 = vpack.c.b16 %v1236, %v1235
      %v1277 = vpack.c.b16 %v1238, %v1237
      %v1278 = vpack.c.b16 %v1240, %v1239
      %v1279 = vpack.c.b16 %v1242, %v1241
      %v1280 = vpack.c.b16 %v1244, %v1243
      %v1317 = vsel %vm630, %v836, 0
      %v1319 = vsel %vm630, %v837, 0
      %v1322 = vsel %vm630, %v963, 0
      %v1325 = vsel %vm630, %v964, 0
      %1327 = vmatpush.bf16.msra.mxu0 %v1252
      %1328 = vmatpush.bf16.msra.mxu0 %v1251
      %1329 = vmatpush.bf16.msra.mxu0 %v1250
      %1330 = vmatpush.bf16.msra.mxu0 %v1249
      %1331 = vmatpush.bf16.msra.mxu0 %v1248
      %1332 = vmatpush.bf16.msra.mxu0 %v1247
      %1333 = vmatpush.bf16.msra.mxu0 %v1246
      %1334 = vmatpush.bf16.msra.mxu0 %v1245
      %1335 = vmatmul.bf16.gmra.mxu0 %v967
      %v1336 = vpop.f32.mrf.mxu0
      %v1337 = vadd.f32 0.0, %v1336
      %v1338 = vpop.f32.mrf.mxu0
      %v1339 = vadd.f32 0.0, %v1338
      %1340 = vmatmul.bf16.gmra.mxu0 %v971
      %v1341 = vpop.f32.mrf.mxu0
      %v1342 = vadd.f32 0.0, %v1341
      %v1343 = vpop.f32.mrf.mxu0
      %v1344 = vadd.f32 0.0, %v1343
      %1345 = vmatmul.bf16.gmra.mxu0 %v975
      %v1346 = vpop.f32.mrf.mxu0
      %v1347 = vadd.f32 0.0, %v1346
      %v1348 = vpop.f32.mrf.mxu0
      %v1349 = vadd.f32 0.0, %v1348
      %1350 = vmatmul.bf16.gmra.mxu0 %v979
      %v1351 = vpop.f32.mrf.mxu0
      %v1352 = vadd.f32 0.0, %v1351
      %v1353 = vpop.f32.mrf.mxu0
      %1354 = vdwg.mxu0
      %1355 = vmatpush.bf16.msra.mxu0 %v1260
      %1356 = vmatpush.bf16.msra.mxu0 %v1259
      %1357 = vmatpush.bf16.msra.mxu0 %v1258
      %1358 = vmatpush.bf16.msra.mxu0 %v1257
      %1359 = vmatpush.bf16.msra.mxu0 %v1256
      %1360 = vmatpush.bf16.msra.mxu0 %v1255
      %1361 = vmatpush.bf16.msra.mxu0 %v1254
      %1362 = vmatpush.bf16.msra.mxu0 %v1253
      %1363 = vmatmul.bf16.gmra.mxu0 %v983
      %v1364 = vpop.f32.mrf.mxu0
      %v1365 = vadd.f32 %v1337, %v1364
      %v1366 = vpop.f32.mrf.mxu0
      %v1367 = vadd.f32 %v1339, %v1366
      %1368 = vmatmul.bf16.gmra.mxu0 %v987
      %v1369 = vpop.f32.mrf.mxu0
      %v1370 = vadd.f32 %v1342, %v1369
      %v1371 = vpop.f32.mrf.mxu0
      %v1372 = vadd.f32 %v1344, %v1371
      %1373 = vmatmul.bf16.gmra.mxu0 %v991
      %v1374 = vpop.f32.mrf.mxu0
      %v1375 = vadd.f32 %v1347, %v1374
      %v1376 = vpop.f32.mrf.mxu0
      %v1377 = vadd.f32 %v1349, %v1376
      %1378 = vmatmul.bf16.gmra.mxu0 %v995
      %v1379 = vpop.f32.mrf.mxu0
      %v1380 = vadd.f32 %v1352, %v1379
      %v1381 = vpop.f32.mrf.mxu0
      %1382 = vdwg.mxu0
      %1383 = vmatpush.bf16.msra.mxu0 %v1268
      %1384 = vmatpush.bf16.msra.mxu0 %v1267
      %1385 = vmatpush.bf16.msra.mxu0 %v1266
      %1386 = vmatpush.bf16.msra.mxu0 %v1265
      %1387 = vmatpush.bf16.msra.mxu0 %v1264
      %1388 = vmatpush.bf16.msra.mxu0 %v1263
      %1389 = vmatpush.bf16.msra.mxu0 %v1262
      %1390 = vmatpush.bf16.msra.mxu0 %v1261
      %1391 = vmatmul.bf16.gmra.mxu0 %v999
      %v1392 = vpop.f32.mrf.mxu0
      %v1393 = vadd.f32 %v1365, %v1392
      %v1394 = vpop.f32.mrf.mxu0
      %v1395 = vadd.f32 %v1367, %v1394
      %1396 = vmatmul.bf16.gmra.mxu0 %v1003
      %v1397 = vpop.f32.mrf.mxu0
      %v1398 = vadd.f32 %v1370, %v1397
      %v1399 = vpop.f32.mrf.mxu0
      %v1400 = vadd.f32 %v1372, %v1399
      %1401 = vmatmul.bf16.gmra.mxu0 %v1007
      %v1402 = vpop.f32.mrf.mxu0
      %v1403 = vadd.f32 %v1375, %v1402
      %v1404 = vpop.f32.mrf.mxu0
      %v1405 = vadd.f32 %v1377, %v1404
      %1406 = vmatmul.bf16.gmra.mxu0 %v1011
      %v1407 = vpop.f32.mrf.mxu0
      %v1408 = vadd.f32 %v1380, %v1407
      %v1409 = vpop.f32.mrf.mxu0
      %1410 = vdwg.mxu0
      %1411 = vmatpush.bf16.msra.mxu0 %v1276
      %1412 = vmatpush.bf16.msra.mxu0 %v1275
      %1413 = vmatpush.bf16.msra.mxu0 %v1274
      %1414 = vmatpush.bf16.msra.mxu0 %v1273
      %1415 = vmatpush.bf16.msra.mxu0 %v1272
      %1416 = vmatpush.bf16.msra.mxu0 %v1271
      %1417 = vmatpush.bf16.msra.mxu0 %v1270
      %1418 = vmatpush.bf16.msra.mxu0 %v1269
      %1419 = vmatmul.bf16.gmra.mxu0 %v1015
      %v1420 = vpop.f32.mrf.mxu0
      %v1421 = vadd.f32 %v1393, %v1420
      %v1422 = vpop.f32.mrf.mxu0
      %v1423 = vadd.f32 %v1395, %v1422
      %1424 = vmatmul.bf16.gmra.mxu0 %v1019
      %v1425 = vpop.f32.mrf.mxu0
      %v1426 = vadd.f32 %v1398, %v1425
      %v1427 = vpop.f32.mrf.mxu0
      %v1428 = vadd.f32 %v1400, %v1427
      %1429 = vmatmul.bf16.gmra.mxu0 %v1023
      %v1430 = vpop.f32.mrf.mxu0
      %v1431 = vadd.f32 %v1403, %v1430
      %v1432 = vpop.f32.mrf.mxu0
      %v1433 = vadd.f32 %v1405, %v1432
      %1434 = vmatmul.bf16.gmra.mxu0 %v1027
      %v1435 = vpop.f32.mrf.mxu0
      %v1436 = vadd.f32 %v1408, %v1435
      %v1437 = vpop.f32.mrf.mxu0
      %1438 = vdwg.mxu0
      %1439 = vmatpush.bf16.msra.mxu0 0
      %1440 = vmatpush.bf16.msra.mxu0 0
      %1441 = vmatpush.bf16.msra.mxu0 0
      %1442 = vmatpush.bf16.msra.mxu0 0
      %1443 = vmatpush.bf16.msra.mxu0 %v1280
      %1444 = vmatpush.bf16.msra.mxu0 %v1279
      %1445 = vmatpush.bf16.msra.mxu0 %v1278
      %1446 = vmatpush.bf16.msra.mxu0 %v1277
      %1447 = vmatmul.bf16.gmra.mxu0 %v1317
      %v1448 = vpop.f32.mrf.mxu0
      %v1449 = vadd.f32 %v1421, %v1448
      %v1450 = vpop.f32.mrf.mxu0
      %v1451 = vadd.f32 %v1423, %v1450
      %1452 = vmatmul.bf16.gmra.mxu0 %v1319
      %v1453 = vpop.f32.mrf.mxu0
      %v1454 = vadd.f32 %v1426, %v1453
      %v1455 = vpop.f32.mrf.mxu0
      %v1456 = vadd.f32 %v1428, %v1455
      %1457 = vmatmul.bf16.gmra.mxu0 %v1322
      %v1458 = vpop.f32.mrf.mxu0
      %v1459 = vadd.f32 %v1431, %v1458
      %v1460 = vpop.f32.mrf.mxu0
      %v1461 = vadd.f32 %v1433, %v1460
      %1462 = vmatmul.bf16.gmra.mxu0 %v1325
      %v1463 = vpop.f32.mrf.mxu0
      %v1464 = vadd.f32 %v1436, %v1463
      %v1465 = vpop.f32.mrf.mxu0
      %1466 = vdwg.mxu0
      %v1467 = vld [vmem:[%s4] sm:$0x1]
      %v1468 = vperm.slane %v1467, 0
      %v1469 = vmul.f32 %v1449, %v1468
      %v1470 = vmul.f32 %v1451, %v1468
      %v1471 = vmul.f32 %v1454, %v1468
      %v1472 = vmul.f32 %v1456, %v1468
      %v1473 = vmul.f32 %v1459, %v1468
      %v1474 = vmul.f32 %v1461, %v1468
      %v1475 = vmul.f32 %v1464, %v1468
      %v1476 = vld [vmem:[%s4 + $0x1] sm:$0x1]
      %v1477 = vperm.slane %v1476, 0
      %v1478 = vadd.f32 %v1469, %v1477
      %v1479 = vadd.f32 %v1470, %v1477
      %v1480 = vadd.f32 %v1471, %v1477
      %v1481 = vadd.f32 %v1472, %v1477
      %v1482 = vadd.f32 %v1473, %v1477
      %v1483 = vadd.f32 %v1474, %v1477
      %v1484 = vadd.f32 %v1475, %v1477
      %v1485 = vmax.f32 %v1478, 0.0
      %v1486 = vmax.f32 %v1479, 0.0
      %v1487 = vmax.f32 %v1480, 0.0
      %v1488 = vmax.f32 %v1481, 0.0
      %v1489 = vmax.f32 %v1482, 0.0
      %v1490 = vmax.f32 %v1483, 0.0
      %v1491 = vmax.f32 %v1484, 0.0
      %1492 = vst.msk [vmem:[#allocation4] sm:$0xff] %vm630, %v1485
      %1493 = vst.msk [vmem:[#allocation4 + $0x8] sm:$0xff] %vm630, %v1486
      %1494 = vst.msk [vmem:[#allocation4 + $0x10] sm:$0xff] %vm630, %v1487
      %1495 = vst.msk [vmem:[#allocation4 + $0x18] sm:$0xff] %vm630, %v1488
      %1496 = vst.msk [vmem:[#allocation4 + $0x20] sm:$0xff] %vm630, %v1489
      %1497 = vst.msk [vmem:[#allocation4 + $0x28] sm:$0xff] %vm630, %v1490
      %1498 = vst.msk [vmem:[#allocation4 + $0x30] sm:$0xff] %vm630, %v1491
      %1499 = vst.msk [vmem:[#allocation5] sm:$0xff] %vm630, 0.0
      %1500 = vst.msk [vmem:[#allocation5 + $0x8] sm:$0xff] %vm630, 0.0
      %1501 = vst.msk [vmem:[#allocation5 + $0x10] sm:$0xff] %vm630, 0.0
      %1502 = vst.msk [vmem:[#allocation5 + $0x18] sm:$0xff] %vm630, 0.0
      %v1503 = vld [vmem:[#allocation4] ss:$2 sm:$0x3]
      %s1504 = scalar_lea.vmem [#allocation4], 1
      %v1505 = vld [vmem:[%s1504] ss:$2 sm:$0x3]
      %s1506 = scalar_lea.vmem [#allocation4], 7
      %v1507 = vld [vmem:[%s1506] ss:$2 sm:$0x3]
      %s1508 = scalar_lea.vmem [#allocation4], 8
      %v1509 = vld [vmem:[%s1508] ss:$2 sm:$0x3]
      %v1510 = vmax.f32 %v1503, %v1505
      %v1511 = vmax.f32 %v1507, %v1509
      %v1512 = vmax.f32 %v1510, %v1511
      %vm1513 = vcmask 517120
      %1514 = vst.msk [vmem:[#allocation5 + $0x5] sm:$0x3] %vm1513, %v1512
      %s1515 = scalar_lea.vmem [#allocation4], 14
      %v1516 = vld [vmem:[%s1515] ss:$2 sm:$0x3]
      %s1517 = scalar_lea.vmem [#allocation4], 15
      %v1518 = vld [vmem:[%s1517] ss:$2 sm:$0x3]
      %s1519 = scalar_lea.vmem [#allocation4], 21
      %v1520 = vld [vmem:[%s1519] ss:$2 sm:$0x3]
      %s1521 = scalar_lea.vmem [#allocation4], 22
      %v1522 = vld [vmem:[%s1521] ss:$2 sm:$0x3]
      %v1523 = vmax.f32 %v1516, %v1518
      %v1524 = vmax.f32 %v1520, %v1522
      %v1525 = vmax.f32 %v1523, %v1524
      %1526 = vst.msk [vmem:[#allocation5 + $0x9] sm:$0x3] %vm1513, %v1525
      %v1527 = vld [vmem:[#allocation5] sm:$0xff]
      %v1528 = vld [vmem:[#allocation5 + $0x8] sm:$0xff]
      %v1529 = vpack.c.bf16 %v1527, %v1527
      %v1530 = vpack.c.bf16 %v1528, %v1528
      %v1531 = vld [vmem:[#allocation5 + $0x1] sm:$0xff]
      %v1532 = vld [vmem:[#allocation5 + $0x9] sm:$0xff]
      %v1533 = vpack.c.bf16 %v1531, %v1531
      %v1534 = vpack.c.bf16 %v1532, %v1532
      %v1535 = vld [vmem:[#allocation5 + $0x2] sm:$0xff]
      %v1536 = vld [vmem:[#allocation5 + $0xa] sm:$0xff]
      %v1537 = vpack.c.bf16 %v1535, %v1535
      %v1538 = vpack.c.bf16 %v1536, %v1536
      %v1539 = vld [vmem:[#allocation5 + $0x4] sm:$0xff]
      %v1540 = vld [vmem:[#allocation5 + $0xc] sm:$0xff]
      %v1541 = vpack.c.bf16 %v1539, %v1539
      %v1542 = vpack.c.bf16 %v1540, %v1540
      %v1543 = vld [vmem:[#allocation5 + $0x5] sm:$0xff]
      %v1544 = vld [vmem:[#allocation5 + $0xd] sm:$0xff]
      %v1545 = vpack.c.bf16 %v1543, %v1543
      %v1546 = vpack.c.bf16 %v1544, %v1544
      %v1547 = vld [vmem:[#allocation5 + $0x6] sm:$0xff]
      %v1548 = vld [vmem:[#allocation5 + $0xe] sm:$0xff]
      %v1549 = vpack.c.bf16 %v1547, %v1547
      %v1550 = vpack.c.bf16 %v1548, %v1548
      %v1551 = vld [vmem:[#allocation5 + $0x10] sm:$0xff]
      %v1552 = vpack.c.bf16 %v1551, %v1551
      %v1553 = vld [vmem:[#allocation5 + $0x11] sm:$0xff]
      %v1554 = vpack.c.bf16 %v1553, %v1553
      %v1555 = vld [vmem:[#allocation5 + $0x12] sm:$0xff]
      %v1556 = vpack.c.bf16 %v1555, %v1555
      %v1559 = vunpack.c.l.b16 %v1529
      %v1560 = vunpack.c.l.b16 %v1530
      %v1561 = vpack.c.b16 %v1560, %v1559
      %v1564 = vunpack.c.l.b16 %v1533
      %v1565 = vunpack.c.l.b16 %v1534
      %v1566 = vpack.c.b16 %v1565, %v1564
      %1567 = vrot.lane.b32.xlu0 %v1566, 64
      %v1568 = vpop.permute.xlu0 %1567
      %v1571 = vunpack.c.l.b16 %v1537
      %v1572 = vunpack.c.l.b16 %v1538
      %v1573 = vpack.c.b16 %v1572, %v1571
      %v1576 = vunpack.c.l.b16 %v1541
      %v1577 = vunpack.c.l.b16 %v1542
      %v1578 = vpack.c.b16 %v1577, %v1576
      %1579 = vrot.lane.b32.xlu0 %v1578, 64
      %v1580 = vpop.permute.xlu0 %1579
      %v1583 = vunpack.c.l.b16 %v1545
      %v1584 = vunpack.c.l.b16 %v1546
      %v1585 = vpack.c.b16 %v1584, %v1583
      %v1588 = vunpack.c.l.b16 %v1549
      %v1589 = vunpack.c.l.b16 %v1550
      %v1590 = vpack.c.b16 %v1589, %v1588
      %1591 = vrot.lane.b32.xlu0 %v1590, 64
      %v1592 = vpop.permute.xlu0 %1591
      %v1594 = vunpack.c.l.b16 %v1552
      %v1595 = vpack.c.b16 %v1594, %v1560
      %v1597 = vunpack.c.l.b16 %v1554
      %v1598 = vpack.c.b16 %v1597, %v1565
      %1599 = vrot.lane.b32.xlu0 %v1598, 64
      %v1600 = vpop.permute.xlu0 %1599
      %v1602 = vunpack.c.l.b16 %v1556
      %v1603 = vpack.c.b16 %v1602, %v1572
      %v1606 = vsel %vm630, %v1561, %v1568
      %v1610 = vsel %vm630, %v1573, %v1580
      %v1614 = vsel %vm630, %v1585, %v1592
      %v1618 = vsel %vm630, %v1595, %v1600
      %v1620 = vld [vmem:[%s5] sm:$0xf]
      %v1621 = vld [vmem:[%s5 + $0x4] sm:$0xf]
      %v1622 = vld [vmem:[%s5 + $0x8] sm:$0xf]
      %v1623 = vld [vmem:[%s5 + $0xc] sm:$0xf]
      %v1624 = vld [vmem:[%s5 + $0x10] sm:$0xf]
      %v1625 = vld [vmem:[%s5 + $0x14] sm:$0xf]
      %v1626 = vld [vmem:[%s5 + $0x18] sm:$0xf]
      %v1627 = vld [vmem:[%s5 + $0x1c] sm:$0xf]
      %v1628 = vld [vmem:[%s5 + $0x20] sm:$0xf]
      %v1629 = vld [vmem:[%s5 + $0x24] sm:$0xf]
      %v1630 = vld [vmem:[%s5 + $0x28] sm:$0xf]
      %v1631 = vld [vmem:[%s5 + $0x2c] sm:$0xf]
      %v1632 = vld [vmem:[%s5 + $0x30] sm:$0xf]
      %v1633 = vld [vmem:[%s5 + $0x34] sm:$0xf]
      %v1634 = vld [vmem:[%s5 + $0x38] sm:$0xf]
      %v1635 = vld [vmem:[%s5 + $0x3c] sm:$0xf]
      %v1636 = vld [vmem:[%s5 + $0x40] sm:$0xf]
      %v1637 = vld [vmem:[%s5 + $0x44] sm:$0xf]
      %v1638 = vld [vmem:[%s5 + $0x48] sm:$0xf]
      %v1639 = vld [vmem:[%s5 + $0x4c] sm:$0xf]
      %v1640 = vld [vmem:[%s5 + $0x50] sm:$0xf]
      %v1641 = vld [vmem:[%s5 + $0x54] sm:$0xf]
      %v1642 = vld [vmem:[%s5 + $0x58] sm:$0xf]
      %v1643 = vld [vmem:[%s5 + $0x5c] sm:$0xf]
      %v1644 = vld [vmem:[%s5 + $0x60] sm:$0xf]
      %v1645 = vld [vmem:[%s5 + $0x64] sm:$0xf]
      %v1646 = vld [vmem:[%s5 + $0x68] sm:$0xf]
      %v1647 = vld [vmem:[%s5 + $0x6c] sm:$0xf]
      %v1648 = vld [vmem:[%s5 + $0x70] sm:$0xf]
      %v1649 = vld [vmem:[%s5 + $0x74] sm:$0xf]
      %v1650 = vld [vmem:[%s5 + $0x78] sm:$0xf]
      %v1651 = vld [vmem:[%s5 + $0x7c] sm:$0xf]
      %v1652 = vld [vmem:[%s5 + $0x80] sm:$0xf]
      %v1653 = vld [vmem:[%s5 + $0x84] sm:$0xf]
      %v1654 = vld [vmem:[%s5 + $0x88] sm:$0xf]
      %v1655 = vld [vmem:[%s5 + $0x8c] sm:$0xf]
      %v1656 = vld [vmem:[%s5 + $0x90] sm:$0xf]
      %v1657 = vld [vmem:[%s5 + $0x94] sm:$0xf]
      %v1658 = vld [vmem:[%s5 + $0x98] sm:$0xf]
      %v1659 = vld [vmem:[%s5 + $0x9c] sm:$0xf]
      %v1660 = vld [vmem:[%s5 + $0xa0] sm:$0xf]
      %v1661 = vld [vmem:[%s5 + $0xa4] sm:$0xf]
      %v1662 = vld [vmem:[%s5 + $0xa8] sm:$0xf]
      %v1663 = vld [vmem:[%s5 + $0xac] sm:$0xf]
      %v1664 = vld [vmem:[%s5 + $0xb0] sm:$0xf]
      %v1665 = vld [vmem:[%s5 + $0xb4] sm:$0xf]
      %v1666 = vld [vmem:[%s5 + $0xb8] sm:$0xf]
      %v1667 = vld [vmem:[%s5 + $0xbc] sm:$0xf]
      %v1668 = vld [vmem:[%s5 + $0xc0] sm:$0xf]
      %v1669 = vld [vmem:[%s5 + $0xc4] sm:$0xf]
      %v1670 = vld [vmem:[%s5 + $0xc8] sm:$0xf]
      %v1671 = vld [vmem:[%s5 + $0xcc] sm:$0xf]
      %v1672 = vld [vmem:[%s5 + $0xd0] sm:$0xf]
      %v1673 = vld [vmem:[%s5 + $0xd4] sm:$0xf]
      %v1674 = vld [vmem:[%s5 + $0xd8] sm:$0xf]
      %v1675 = vld [vmem:[%s5 + $0xdc] sm:$0xf]
      %v1676 = vld [vmem:[%s5 + $0xe0] sm:$0xf]
      %v1677 = vld [vmem:[%s5 + $0xe4] sm:$0xf]
      %v1678 = vld [vmem:[%s5 + $0xe8] sm:$0xf]
      %v1679 = vld [vmem:[%s5 + $0xec] sm:$0xf]
      %v1680 = vld [vmem:[%s5 + $0xf0] sm:$0xf]
      %v1681 = vld [vmem:[%s5 + $0xf4] sm:$0xf]
      %v1682 = vld [vmem:[%s5 + $0xf8] sm:$0xf]
      %v1683 = vld [vmem:[%s5 + $0xfc] sm:$0xf]
      %v1684 = vld [vmem:[%s5 + $0x100] sm:$0xf]
      %v1685 = vld [vmem:[%s5 + $0x104] sm:$0xf]
      %v1686 = vld [vmem:[%s5 + $0x108] sm:$0xf]
      %v1687 = vld [vmem:[%s5 + $0x10c] sm:$0xf]
      %v1688 = vld [vmem:[%s5 + $0x110] sm:$0xf]
      %v1689 = vld [vmem:[%s5 + $0x114] sm:$0xf]
      %v1690 = vld [vmem:[%s5 + $0x118] sm:$0xf]
      %v1691 = vld [vmem:[%s5 + $0x11c] sm:$0xf]
      %v1764 = vunpack.c.l.b16 %v1620
      %v1765 = vunpack.c.l.b16 %v1621
      %v1766 = vunpack.c.l.b16 %v1622
      %v1767 = vunpack.c.l.b16 %v1623
      %v1768 = vunpack.c.l.b16 %v1624
      %v1769 = vunpack.c.l.b16 %v1625
      %v1770 = vunpack.c.l.b16 %v1626
      %v1771 = vunpack.c.l.b16 %v1627
      %v1772 = vunpack.c.l.b16 %v1628
      %v1773 = vunpack.c.l.b16 %v1629
      %v1774 = vunpack.c.l.b16 %v1630
      %v1775 = vunpack.c.l.b16 %v1631
      %v1776 = vunpack.c.l.b16 %v1632
      %v1777 = vunpack.c.l.b16 %v1633
      %v1778 = vunpack.c.l.b16 %v1634
      %v1779 = vunpack.c.l.b16 %v1635
      %v1780 = vunpack.c.l.b16 %v1636
      %v1781 = vunpack.c.l.b16 %v1637
      %v1782 = vunpack.c.l.b16 %v1638
      %v1783 = vunpack.c.l.b16 %v1639
      %v1784 = vunpack.c.l.b16 %v1640
      %v1785 = vunpack.c.l.b16 %v1641
      %v1786 = vunpack.c.l.b16 %v1642
      %v1787 = vunpack.c.l.b16 %v1643
      %v1788 = vunpack.c.l.b16 %v1644
      %v1789 = vunpack.c.l.b16 %v1645
      %v1790 = vunpack.c.l.b16 %v1646
      %v1791 = vunpack.c.l.b16 %v1647
      %v1792 = vunpack.c.l.b16 %v1648
      %v1793 = vunpack.c.l.b16 %v1649
      %v1794 = vunpack.c.l.b16 %v1650
      %v1795 = vunpack.c.l.b16 %v1651
      %v1796 = vunpack.c.l.b16 %v1652
      %v1797 = vunpack.c.l.b16 %v1653
      %v1798 = vunpack.c.l.b16 %v1654
      %v1799 = vunpack.c.l.b16 %v1655
      %v1800 = vunpack.c.l.b16 %v1656
      %v1801 = vunpack.c.l.b16 %v1657
      %v1802 = vunpack.c.l.b16 %v1658
      %v1803 = vunpack.c.l.b16 %v1659
      %v1804 = vunpack.c.l.b16 %v1660
      %v1805 = vunpack.c.l.b16 %v1661
      %v1806 = vunpack.c.l.b16 %v1662
      %v1807 = vunpack.c.l.b16 %v1663
      %v1808 = vunpack.c.l.b16 %v1664
      %v1809 = vunpack.c.l.b16 %v1665
      %v1810 = vunpack.c.l.b16 %v1666
      %v1811 = vunpack.c.l.b16 %v1667
      %v1812 = vunpack.c.l.b16 %v1668
      %v1813 = vunpack.c.l.b16 %v1669
      %v1814 = vunpack.c.l.b16 %v1670
      %v1815 = vunpack.c.l.b16 %v1671
      %v1816 = vunpack.c.l.b16 %v1672
      %v1817 = vunpack.c.l.b16 %v1673
      %v1818 = vunpack.c.l.b16 %v1674
      %v1819 = vunpack.c.l.b16 %v1675
      %v1820 = vunpack.c.l.b16 %v1676
      %v1821 = vunpack.c.l.b16 %v1677
      %v1822 = vunpack.c.l.b16 %v1678
      %v1823 = vunpack.c.l.b16 %v1679
      %v1824 = vunpack.c.l.b16 %v1680
      %v1825 = vunpack.c.l.b16 %v1681
      %v1826 = vunpack.c.l.b16 %v1682
      %v1827 = vunpack.c.l.b16 %v1683
      %v1828 = vunpack.c.l.b16 %v1684
      %v1829 = vunpack.c.l.b16 %v1685
      %v1830 = vunpack.c.l.b16 %v1686
      %v1831 = vunpack.c.l.b16 %v1687
      %v1832 = vunpack.c.l.b16 %v1688
      %v1833 = vunpack.c.l.b16 %v1689
      %v1834 = vunpack.c.l.b16 %v1690
      %v1835 = vunpack.c.l.b16 %v1691
      %v1836 = vpack.c.b16 %v1765, %v1764
      %v1837 = vpack.c.b16 %v1767, %v1766
      %v1838 = vpack.c.b16 %v1769, %v1768
      %v1839 = vpack.c.b16 %v1771, %v1770
      %v1840 = vpack.c.b16 %v1773, %v1772
      %v1841 = vpack.c.b16 %v1775, %v1774
      %v1842 = vpack.c.b16 %v1777, %v1776
      %v1843 = vpack.c.b16 %v1779, %v1778
      %v1844 = vpack.c.b16 %v1781, %v1780
      %v1845 = vpack.c.b16 %v1783, %v1782
      %v1846 = vpack.c.b16 %v1785, %v1784
      %v1847 = vpack.c.b16 %v1787, %v1786
      %v1848 = vpack.c.b16 %v1789, %v1788
      %v1849 = vpack.c.b16 %v1791, %v1790
      %v1850 = vpack.c.b16 %v1793, %v1792
      %v1851 = vpack.c.b16 %v1795, %v1794
      %v1852 = vpack.c.b16 %v1797, %v1796
      %v1853 = vpack.c.b16 %v1799, %v1798
      %v1854 = vpack.c.b16 %v1801, %v1800
      %v1855 = vpack.c.b16 %v1803, %v1802
      %v1856 = vpack.c.b16 %v1805, %v1804
      %v1857 = vpack.c.b16 %v1807, %v1806
      %v1858 = vpack.c.b16 %v1809, %v1808
      %v1859 = vpack.c.b16 %v1811, %v1810
      %v1860 = vpack.c.b16 %v1813, %v1812
      %v1861 = vpack.c.b16 %v1815, %v1814
      %v1862 = vpack.c.b16 %v1817, %v1816
      %v1863 = vpack.c.b16 %v1819, %v1818
      %v1864 = vpack.c.b16 %v1821, %v1820
      %v1865 = vpack.c.b16 %v1823, %v1822
      %v1866 = vpack.c.b16 %v1825, %v1824
      %v1867 = vpack.c.b16 %v1827, %v1826
      %v1868 = vpack.c.b16 %v1829, %v1828
      %v1869 = vpack.c.b16 %v1831, %v1830
      %v1870 = vpack.c.b16 %v1833, %v1832
      %v1871 = vpack.c.b16 %v1835, %v1834
      %v1909 = vsel %vm630, %v1603, 0
      %1911 = vmatpush.bf16.msra.mxu0 %v1843
      %1912 = vmatpush.bf16.msra.mxu0 %v1842
      %1913 = vmatpush.bf16.msra.mxu0 %v1841
      %1914 = vmatpush.bf16.msra.mxu0 %v1840
      %1915 = vmatpush.bf16.msra.mxu0 %v1839
      %1916 = vmatpush.bf16.msra.mxu0 %v1838
      %1917 = vmatpush.bf16.msra.mxu0 %v1837
      %1918 = vmatpush.bf16.msra.mxu0 %v1836
      %1919 = vmatmul.bf16.gmra.mxu0 %v1606
      %v1920 = vpop.f32.mrf.mxu0
      %v1921 = vadd.f32 0.0, %v1920
      %v1922 = vpop.f32.mrf.mxu0
      %1923 = vdwg.mxu0
      %1924 = vmatpush.bf16.msra.mxu0 %v1851
      %1925 = vmatpush.bf16.msra.mxu0 %v1850
      %1926 = vmatpush.bf16.msra.mxu0 %v1849
      %1927 = vmatpush.bf16.msra.mxu0 %v1848
      %1928 = vmatpush.bf16.msra.mxu0 %v1847
      %1929 = vmatpush.bf16.msra.mxu0 %v1846
      %1930 = vmatpush.bf16.msra.mxu0 %v1845
      %1931 = vmatpush.bf16.msra.mxu0 %v1844
      %1932 = vmatmul.bf16.gmra.mxu0 %v1610
      %v1933 = vpop.f32.mrf.mxu0
      %v1934 = vadd.f32 %v1921, %v1933
      %v1935 = vpop.f32.mrf.mxu0
      %1936 = vdwg.mxu0
      %1937 = vmatpush.bf16.msra.mxu0 %v1859
      %1938 = vmatpush.bf16.msra.mxu0 %v1858
      %1939 = vmatpush.bf16.msra.mxu0 %v1857
      %1940 = vmatpush.bf16.msra.mxu0 %v1856
      %1941 = vmatpush.bf16.msra.mxu0 %v1855
      %1942 = vmatpush.bf16.msra.mxu0 %v1854
      %1943 = vmatpush.bf16.msra.mxu0 %v1853
      %1944 = vmatpush.bf16.msra.mxu0 %v1852
      %1945 = vmatmul.bf16.gmra.mxu0 %v1614
      %v1946 = vpop.f32.mrf.mxu0
      %v1947 = vadd.f32 %v1934, %v1946
      %v1948 = vpop.f32.mrf.mxu0
      %1949 = vdwg.mxu0
      %1950 = vmatpush.bf16.msra.mxu0 %v1867
      %1951 = vmatpush.bf16.msra.mxu0 %v1866
      %1952 = vmatpush.bf16.msra.mxu0 %v1865
      %1953 = vmatpush.bf16.msra.mxu0 %v1864
      %1954 = vmatpush.bf16.msra.mxu0 %v1863
      %1955 = vmatpush.bf16.msra.mxu0 %v1862
      %1956 = vmatpush.bf16.msra.mxu0 %v1861
      %1957 = vmatpush.bf16.msra.mxu0 %v1860
      %1958 = vmatmul.bf16.gmra.mxu0 %v1618
      %v1959 = vpop.f32.mrf.mxu0
      %v1960 = vadd.f32 %v1947, %v1959
      %v1961 = vpop.f32.mrf.mxu0
      %1962 = vdwg.mxu0
      %1963 = vmatpush.bf16.msra.mxu0 0
      %1964 = vmatpush.bf16.msra.mxu0 0
      %1965 = vmatpush.bf16.msra.mxu0 0
      %1966 = vmatpush.bf16.msra.mxu0 0
      %1967 = vmatpush.bf16.msra.mxu0 %v1871
      %1968 = vmatpush.bf16.msra.mxu0 %v1870
      %1969 = vmatpush.bf16.msra.mxu0 %v1869
      %1970 = vmatpush.bf16.msra.mxu0 %v1868
      %1971 = vmatmul.bf16.gmra.mxu0 %v1909
      %v1972 = vpop.f32.mrf.mxu0
      %v1973 = vadd.f32 %v1960, %v1972
      %v1974 = vpop.f32.mrf.mxu0
      %1975 = vdwg.mxu0
      %v1976 = vld [vmem:[%s6] sm:$0x1]
      %v1977 = vperm.slane %v1976, 0
      %v1978 = vmul.f32 %v1973, %v1977
      %v1979 = vld [vmem:[%s6 + $0x1] sm:$0x1]
      %v1980 = vperm.slane %v1979, 0
      %v1981 = vadd.f32 %v1978, %v1980
      %v1982 = vmax.f32 %v1981, 0.0
      %1983 = vst.msk [vmem:[#allocation5 + $0x5] sm:$0x3] %vm1513, %v1982
      %vm1984 = vcmask 521220
      %1985 = vst.msk [vmem:[#allocation5 + $0x5] sm:$0x30] %vm1984, %v1982
      %v1986 = vld [vmem:[#allocation5] sm:$0xff]
      %v1987 = vld [vmem:[#allocation5 + $0x8] sm:$0xff]
      %v1988 = vpack.c.bf16 %v1986, %v1986
      %v1989 = vpack.c.bf16 %v1987, %v1987
      %v1990 = vld [vmem:[#allocation5 + $0x1] sm:$0xff]
      %v1991 = vld [vmem:[#allocation5 + $0x9] sm:$0xff]
      %v1992 = vpack.c.bf16 %v1990, %v1990
      %v1993 = vpack.c.bf16 %v1991, %v1991
      %v1994 = vld [vmem:[#allocation5 + $0x2] sm:$0xff]
      %v1995 = vld [vmem:[#allocation5 + $0xa] sm:$0xff]
      %v1996 = vpack.c.bf16 %v1994, %v1994
      %v1997 = vpack.c.bf16 %v1995, %v1995
      %v1998 = vld [vmem:[#allocation5 + $0x4] sm:$0xff]
      %v1999 = vld [vmem:[#allocation5 + $0xc] sm:$0xff]
      %v2000 = vpack.c.bf16 %v1998, %v1998
      %v2001 = vpack.c.bf16 %v1999, %v1999
      %v2002 = vld [vmem:[#allocation5 + $0x5] sm:$0xff]
      %v2003 = vld [vmem:[#allocation5 + $0xd] sm:$0xff]
      %v2004 = vpack.c.bf16 %v2002, %v2002
      %v2005 = vpack.c.bf16 %v2003, %v2003
      %v2006 = vld [vmem:[#allocation5 + $0x6] sm:$0xff]
      %v2007 = vld [vmem:[#allocation5 + $0xe] sm:$0xff]
      %v2008 = vpack.c.bf16 %v2006, %v2006
      %v2009 = vpack.c.bf16 %v2007, %v2007
      %v2010 = vld [vmem:[#allocation5 + $0x10] sm:$0xff]
      %v2011 = vpack.c.bf16 %v2010, %v2010
      %v2012 = vld [vmem:[#allocation5 + $0x11] sm:$0xff]
      %v2013 = vpack.c.bf16 %v2012, %v2012
      %v2014 = vld [vmem:[#allocation5 + $0x12] sm:$0xff]
      %v2015 = vpack.c.bf16 %v2014, %v2014
      %v2018 = vunpack.c.l.b16 %v1988
      %v2019 = vunpack.c.l.b16 %v1989
      %v2020 = vpack.c.b16 %v2019, %v2018
      %v2023 = vunpack.c.l.b16 %v1992
      %v2024 = vunpack.c.l.b16 %v1993
      %v2025 = vpack.c.b16 %v2024, %v2023
      %2026 = vrot.lane.b32.xlu0 %v2025, 64
      %v2027 = vpop.permute.xlu0 %2026
      %v2030 = vunpack.c.l.b16 %v1996
      %v2031 = vunpack.c.l.b16 %v1997
      %v2032 = vpack.c.b16 %v2031, %v2030
      %v2035 = vunpack.c.l.b16 %v2000
      %v2036 = vunpack.c.l.b16 %v2001
      %v2037 = vpack.c.b16 %v2036, %v2035
      %2038 = vrot.lane.b32.xlu0 %v2037, 64
      %v2039 = vpop.permute.xlu0 %2038
      %v2042 = vunpack.c.l.b16 %v2004
      %v2043 = vunpack.c.l.b16 %v2005
      %v2044 = vpack.c.b16 %v2043, %v2042
      %v2047 = vunpack.c.l.b16 %v2008
      %v2048 = vunpack.c.l.b16 %v2009
      %v2049 = vpack.c.b16 %v2048, %v2047
      %2050 = vrot.lane.b32.xlu0 %v2049, 64
      %v2051 = vpop.permute.xlu0 %2050
      %v2053 = vunpack.c.l.b16 %v2011
      %v2054 = vpack.c.b16 %v2053, %v2019
      %v2056 = vunpack.c.l.b16 %v2013
      %v2057 = vpack.c.b16 %v2056, %v2024
      %2058 = vrot.lane.b32.xlu0 %v2057, 64
      %v2059 = vpop.permute.xlu0 %2058
      %v2061 = vunpack.c.l.b16 %v2015
      %v2062 = vpack.c.b16 %v2061, %v2031
      %v2065 = vsel %vm630, %v2020, %v2027
      %v2069 = vsel %vm630, %v2032, %v2039
      %v2073 = vsel %vm630, %v2044, %v2051
      %v2077 = vsel %vm630, %v2054, %v2059
      %v2079 = vld [vmem:[%s7] sm:$0xf]
      %v2080 = vld [vmem:[%s7 + $0x4] sm:$0xf]
      %v2081 = vld [vmem:[%s7 + $0x8] sm:$0xf]
      %v2082 = vld [vmem:[%s7 + $0xc] sm:$0xf]
      %v2083 = vld [vmem:[%s7 + $0x10] sm:$0xf]
      %v2084 = vld [vmem:[%s7 + $0x14] sm:$0xf]
      %v2085 = vld [vmem:[%s7 + $0x18] sm:$0xf]
      %v2086 = vld [vmem:[%s7 + $0x1c] sm:$0xf]
      %v2087 = vld [vmem:[%s7 + $0x20] sm:$0xf]
      %v2088 = vld [vmem:[%s7 + $0x24] sm:$0xf]
      %v2089 = vld [vmem:[%s7 + $0x28] sm:$0xf]
      %v2090 = vld [vmem:[%s7 + $0x2c] sm:$0xf]
      %v2091 = vld [vmem:[%s7 + $0x30] sm:$0xf]
      %v2092 = vld [vmem:[%s7 + $0x34] sm:$0xf]
      %v2093 = vld [vmem:[%s7 + $0x38] sm:$0xf]
      %v2094 = vld [vmem:[%s7 + $0x3c] sm:$0xf]
      %v2095 = vld [vmem:[%s7 + $0x40] sm:$0xf]
      %v2096 = vld [vmem:[%s7 + $0x44] sm:$0xf]
      %v2097 = vld [vmem:[%s7 + $0x48] sm:$0xf]
      %v2098 = vld [vmem:[%s7 + $0x4c] sm:$0xf]
      %v2099 = vld [vmem:[%s7 + $0x50] sm:$0xf]
      %v2100 = vld [vmem:[%s7 + $0x54] sm:$0xf]
      %v2101 = vld [vmem:[%s7 + $0x58] sm:$0xf]
      %v2102 = vld [vmem:[%s7 + $0x5c] sm:$0xf]
      %v2103 = vld [vmem:[%s7 + $0x60] sm:$0xf]
      %v2104 = vld [vmem:[%s7 + $0x64] sm:$0xf]
      %v2105 = vld [vmem:[%s7 + $0x68] sm:$0xf]
      %v2106 = vld [vmem:[%s7 + $0x6c] sm:$0xf]
      %v2107 = vld [vmem:[%s7 + $0x70] sm:$0xf]
      %v2108 = vld [vmem:[%s7 + $0x74] sm:$0xf]
      %v2109 = vld [vmem:[%s7 + $0x78] sm:$0xf]
      %v2110 = vld [vmem:[%s7 + $0x7c] sm:$0xf]
      %v2111 = vld [vmem:[%s7 + $0x80] sm:$0xf]
      %v2112 = vld [vmem:[%s7 + $0x84] sm:$0xf]
      %v2113 = vld [vmem:[%s7 + $0x88] sm:$0xf]
      %v2114 = vld [vmem:[%s7 + $0x8c] sm:$0xf]
      %v2115 = vld [vmem:[%s7 + $0x90] sm:$0xf]
      %v2116 = vld [vmem:[%s7 + $0x94] sm:$0xf]
      %v2117 = vld [vmem:[%s7 + $0x98] sm:$0xf]
      %v2118 = vld [vmem:[%s7 + $0x9c] sm:$0xf]
      %v2119 = vld [vmem:[%s7 + $0xa0] sm:$0xf]
      %v2120 = vld [vmem:[%s7 + $0xa4] sm:$0xf]
      %v2121 = vld [vmem:[%s7 + $0xa8] sm:$0xf]
      %v2122 = vld [vmem:[%s7 + $0xac] sm:$0xf]
      %v2123 = vld [vmem:[%s7 + $0xb0] sm:$0xf]
      %v2124 = vld [vmem:[%s7 + $0xb4] sm:$0xf]
      %v2125 = vld [vmem:[%s7 + $0xb8] sm:$0xf]
      %v2126 = vld [vmem:[%s7 + $0xbc] sm:$0xf]
      %v2127 = vld [vmem:[%s7 + $0xc0] sm:$0xf]
      %v2128 = vld [vmem:[%s7 + $0xc4] sm:$0xf]
      %v2129 = vld [vmem:[%s7 + $0xc8] sm:$0xf]
      %v2130 = vld [vmem:[%s7 + $0xcc] sm:$0xf]
      %v2131 = vld [vmem:[%s7 + $0xd0] sm:$0xf]
      %v2132 = vld [vmem:[%s7 + $0xd4] sm:$0xf]
      %v2133 = vld [vmem:[%s7 + $0xd8] sm:$0xf]
      %v2134 = vld [vmem:[%s7 + $0xdc] sm:$0xf]
      %v2135 = vld [vmem:[%s7 + $0xe0] sm:$0xf]
      %v2136 = vld [vmem:[%s7 + $0xe4] sm:$0xf]
      %v2137 = vld [vmem:[%s7 + $0xe8] sm:$0xf]
      %v2138 = vld [vmem:[%s7 + $0xec] sm:$0xf]
      %v2139 = vld [vmem:[%s7 + $0xf0] sm:$0xf]
      %v2140 = vld [vmem:[%s7 + $0xf4] sm:$0xf]
      %v2141 = vld [vmem:[%s7 + $0xf8] sm:$0xf]
      %v2142 = vld [vmem:[%s7 + $0xfc] sm:$0xf]
      %v2143 = vld [vmem:[%s7 + $0x100] sm:$0xf]
      %v2144 = vld [vmem:[%s7 + $0x104] sm:$0xf]
      %v2145 = vld [vmem:[%s7 + $0x108] sm:$0xf]
      %v2146 = vld [vmem:[%s7 + $0x10c] sm:$0xf]
      %v2147 = vld [vmem:[%s7 + $0x110] sm:$0xf]
      %v2148 = vld [vmem:[%s7 + $0x114] sm:$0xf]
      %v2149 = vld [vmem:[%s7 + $0x118] sm:$0xf]
      %v2150 = vld [vmem:[%s7 + $0x11c] sm:$0xf]
      %v2223 = vunpack.c.l.b16 %v2079
      %v2224 = vunpack.c.l.b16 %v2080
      %v2225 = vunpack.c.l.b16 %v2081
      %v2226 = vunpack.c.l.b16 %v2082
      %v2227 = vunpack.c.l.b16 %v2083
      %v2228 = vunpack.c.l.b16 %v2084
      %v2229 = vunpack.c.l.b16 %v2085
      %v2230 = vunpack.c.l.b16 %v2086
      %v2231 = vunpack.c.l.b16 %v2087
      %v2232 = vunpack.c.l.b16 %v2088
      %v2233 = vunpack.c.l.b16 %v2089
      %v2234 = vunpack.c.l.b16 %v2090
      %v2235 = vunpack.c.l.b16 %v2091
      %v2236 = vunpack.c.l.b16 %v2092
      %v2237 = vunpack.c.l.b16 %v2093
      %v2238 = vunpack.c.l.b16 %v2094
      %v2239 = vunpack.c.l.b16 %v2095
      %v2240 = vunpack.c.l.b16 %v2096
      %v2241 = vunpack.c.l.b16 %v2097
      %v2242 = vunpack.c.l.b16 %v2098
      %v2243 = vunpack.c.l.b16 %v2099
      %v2244 = vunpack.c.l.b16 %v2100
      %v2245 = vunpack.c.l.b16 %v2101
      %v2246 = vunpack.c.l.b16 %v2102
      %v2247 = vunpack.c.l.b16 %v2103
      %v2248 = vunpack.c.l.b16 %v2104
      %v2249 = vunpack.c.l.b16 %v2105
      %v2250 = vunpack.c.l.b16 %v2106
      %v2251 = vunpack.c.l.b16 %v2107
      %v2252 = vunpack.c.l.b16 %v2108
      %v2253 = vunpack.c.l.b16 %v2109
      %v2254 = vunpack.c.l.b16 %v2110
      %v2255 = vunpack.c.l.b16 %v2111
      %v2256 = vunpack.c.l.b16 %v2112
      %v2257 = vunpack.c.l.b16 %v2113
      %v2258 = vunpack.c.l.b16 %v2114
      %v2259 = vunpack.c.l.b16 %v2115
      %v2260 = vunpack.c.l.b16 %v2116
      %v2261 = vunpack.c.l.b16 %v2117
      %v2262 = vunpack.c.l.b16 %v2118
      %v2263 = vunpack.c.l.b16 %v2119
      %v2264 = vunpack.c.l.b16 %v2120
      %v2265 = vunpack.c.l.b16 %v2121
      %v2266 = vunpack.c.l.b16 %v2122
      %v2267 = vunpack.c.l.b16 %v2123
      %v2268 = vunpack.c.l.b16 %v2124
      %v2269 = vunpack.c.l.b16 %v2125
      %v2270 = vunpack.c.l.b16 %v2126
      %v2271 = vunpack.c.l.b16 %v2127
      %v2272 = vunpack.c.l.b16 %v2128
      %v2273 = vunpack.c.l.b16 %v2129
      %v2274 = vunpack.c.l.b16 %v2130
      %v2275 = vunpack.c.l.b16 %v2131
      %v2276 = vunpack.c.l.b16 %v2132
      %v2277 = vunpack.c.l.b16 %v2133
      %v2278 = vunpack.c.l.b16 %v2134
      %v2279 = vunpack.c.l.b16 %v2135
      %v2280 = vunpack.c.l.b16 %v2136
      %v2281 = vunpack.c.l.b16 %v2137
      %v2282 = vunpack.c.l.b16 %v2138
      %v2283 = vunpack.c.l.b16 %v2139
      %v2284 = vunpack.c.l.b16 %v2140
      %v2285 = vunpack.c.l.b16 %v2141
      %v2286 = vunpack.c.l.b16 %v2142
      %v2287 = vunpack.c.l.b16 %v2143
      %v2288 = vunpack.c.l.b16 %v2144
      %v2289 = vunpack.c.l.b16 %v2145
      %v2290 = vunpack.c.l.b16 %v2146
      %v2291 = vunpack.c.l.b16 %v2147
      %v2292 = vunpack.c.l.b16 %v2148
      %v2293 = vunpack.c.l.b16 %v2149
      %v2294 = vunpack.c.l.b16 %v2150
      %v2295 = vpack.c.b16 %v2224, %v2223
      %v2296 = vpack.c.b16 %v2226, %v2225
      %v2297 = vpack.c.b16 %v2228, %v2227
      %v2298 = vpack.c.b16 %v2230, %v2229
      %v2299 = vpack.c.b16 %v2232, %v2231
      %v2300 = vpack.c.b16 %v2234, %v2233
      %v2301 = vpack.c.b16 %v2236, %v2235
      %v2302 = vpack.c.b16 %v2238, %v2237
      %v2303 = vpack.c.b16 %v2240, %v2239
      %v2304 = vpack.c.b16 %v2242, %v2241
      %v2305 = vpack.c.b16 %v2244, %v2243
      %v2306 = vpack.c.b16 %v2246, %v2245
      %v2307 = vpack.c.b16 %v2248, %v2247
      %v2308 = vpack.c.b16 %v2250, %v2249
      %v2309 = vpack.c.b16 %v2252, %v2251
      %v2310 = vpack.c.b16 %v2254, %v2253
      %v2311 = vpack.c.b16 %v2256, %v2255
      %v2312 = vpack.c.b16 %v2258, %v2257
      %v2313 = vpack.c.b16 %v2260, %v2259
      %v2314 = vpack.c.b16 %v2262, %v2261
      %v2315 = vpack.c.b16 %v2264, %v2263
      %v2316 = vpack.c.b16 %v2266, %v2265
      %v2317 = vpack.c.b16 %v2268, %v2267
      %v2318 = vpack.c.b16 %v2270, %v2269
      %v2319 = vpack.c.b16 %v2272, %v2271
      %v2320 = vpack.c.b16 %v2274, %v2273
      %v2321 = vpack.c.b16 %v2276, %v2275
      %v2322 = vpack.c.b16 %v2278, %v2277
      %v2323 = vpack.c.b16 %v2280, %v2279
      %v2324 = vpack.c.b16 %v2282, %v2281
      %v2325 = vpack.c.b16 %v2284, %v2283
      %v2326 = vpack.c.b16 %v2286, %v2285
      %v2327 = vpack.c.b16 %v2288, %v2287
      %v2328 = vpack.c.b16 %v2290, %v2289
      %v2329 = vpack.c.b16 %v2292, %v2291
      %v2330 = vpack.c.b16 %v2294, %v2293
      %v2368 = vsel %vm630, %v2062, 0
      %2370 = vmatpush.bf16.msra.mxu0 %v2302
      %2371 = vmatpush.bf16.msra.mxu0 %v2301
      %2372 = vmatpush.bf16.msra.mxu0 %v2300
      %2373 = vmatpush.bf16.msra.mxu0 %v2299
      %2374 = vmatpush.bf16.msra.mxu0 %v2298
      %2375 = vmatpush.bf16.msra.mxu0 %v2297
      %2376 = vmatpush.bf16.msra.mxu0 %v2296
      %2377 = vmatpush.bf16.msra.mxu0 %v2295
      %2378 = vmatmul.bf16.gmra.mxu0 %v2065
      %v2379 = vpop.f32.mrf.mxu0
      %v2380 = vadd.f32 0.0, %v2379
      %v2381 = vpop.f32.mrf.mxu0
      %2382 = vdwg.mxu0
      %2383 = vmatpush.bf16.msra.mxu0 %v2310
      %2384 = vmatpush.bf16.msra.mxu0 %v2309
      %2385 = vmatpush.bf16.msra.mxu0 %v2308
      %2386 = vmatpush.bf16.msra.mxu0 %v2307
      %2387 = vmatpush.bf16.msra.mxu0 %v2306
      %2388 = vmatpush.bf16.msra.mxu0 %v2305
      %2389 = vmatpush.bf16.msra.mxu0 %v2304
      %2390 = vmatpush.bf16.msra.mxu0 %v2303
      %2391 = vmatmul.bf16.gmra.mxu0 %v2069
      %v2392 = vpop.f32.mrf.mxu0
      %v2393 = vadd.f32 %v2380, %v2392
      %v2394 = vpop.f32.mrf.mxu0
      %2395 = vdwg.mxu0
      %2396 = vmatpush.bf16.msra.mxu0 %v2318
      %2397 = vmatpush.bf16.msra.mxu0 %v2317
      %2398 = vmatpush.bf16.msra.mxu0 %v2316
      %2399 = vmatpush.bf16.msra.mxu0 %v2315
      %2400 = vmatpush.bf16.msra.mxu0 %v2314
      %2401 = vmatpush.bf16.msra.mxu0 %v2313
      %2402 = vmatpush.bf16.msra.mxu0 %v2312
      %2403 = vmatpush.bf16.msra.mxu0 %v2311
      %2404 = vmatmul.bf16.gmra.mxu0 %v2073
      %v2405 = vpop.f32.mrf.mxu0
      %v2406 = vadd.f32 %v2393, %v2405
      %v2407 = vpop.f32.mrf.mxu0
      %2408 = vdwg.mxu0
      %2409 = vmatpush.bf16.msra.mxu0 %v2326
      %2410 = vmatpush.bf16.msra.mxu0 %v2325
      %2411 = vmatpush.bf16.msra.mxu0 %v2324
      %2412 = vmatpush.bf16.msra.mxu0 %v2323
      %2413 = vmatpush.bf16.msra.mxu0 %v2322
      %2414 = vmatpush.bf16.msra.mxu0 %v2321
      %2415 = vmatpush.bf16.msra.mxu0 %v2320
      %2416 = vmatpush.bf16.msra.mxu0 %v2319
      %2417 = vmatmul.bf16.gmra.mxu0 %v2077
      %v2418 = vpop.f32.mrf.mxu0
      %v2419 = vadd.f32 %v2406, %v2418
      %v2420 = vpop.f32.mrf.mxu0
      %2421 = vdwg.mxu0
      %2422 = vmatpush.bf16.msra.mxu0 0
      %2423 = vmatpush.bf16.msra.mxu0 0
      %2424 = vmatpush.bf16.msra.mxu0 0
      %2425 = vmatpush.bf16.msra.mxu0 0
      %2426 = vmatpush.bf16.msra.mxu0 %v2330
      %2427 = vmatpush.bf16.msra.mxu0 %v2329
      %2428 = vmatpush.bf16.msra.mxu0 %v2328
      %2429 = vmatpush.bf16.msra.mxu0 %v2327
      %2430 = vmatmul.bf16.gmra.mxu0 %v2368
      %v2431 = vpop.f32.mrf.mxu0
      %v2432 = vadd.f32 %v2419, %v2431
      %v2433 = vpop.f32.mrf.mxu0
      %2434 = vdwg.mxu0
      %v2435 = vld [vmem:[%s8] sm:$0x1]
      %v2436 = vperm.slane %v2435, 0
      %v2437 = vmul.f32 %v2432, %v2436
      %v2438 = vld [vmem:[%s8 + $0x1] sm:$0x1]
      %v2439 = vperm.slane %v2438, 0
      %v2440 = vadd.f32 %v2437, %v2439
      %v2441 = vmax.f32 %v2440, 0.0
      %2442 = vst [vmem:[%s332] sm:$0x3] %v2441
      %2443 = vst [vmem:[%s332 - $0x2] sm:$0x30] %v2441
      %p2444 = scmp.lt.s32.totalorder %s20, 1
      %s2445 = scalar_select %p2444, %s20, 1
      %s2446 = smul.addr %s2445, 4
      %s2447 = scalar_lea.vmem %s9, %s2446
      // Predicated region
      $region57: #{cnn_encoder_forward.1} parent=55 // pred_check
        %p2448 = pneg %p232
      $region58: #{cnn_encoder_forward.1} parent=55 // pred_check_branch
        %2450 = sbr.rel (%p2448) target = $region60
      $region59: #{cnn_encoder_forward.1} parent=55 // pred_region
        _
      $region60: #{cnn_encoder_forward.1} parent=55 // pred_fallthru
        _
    $region56: #{cnn_encoder_forward.1} parent=5 // pred_fallthru
      _
    %p2451 = scmp.le.s32.totalorder 2, %s15
    // Predicated region
    $region61: #{cnn_encoder_forward.1} parent=5 // pred_check
      %p2452 = pneg %p2451
    $region62: #{cnn_encoder_forward.1} parent=5 // pred_check_branch
      %2454 = sbr.rel (%p2452) target = $region64
    $region63: #{cnn_encoder_forward.1} parent=5 // pred_region
      %s2455 = ssub.s32 %s15, 2
      // Predicated region
      $region65: #{cnn_encoder_forward.1} parent=63 // pred_check
        %p2456 = pneg %p238
      $region66: #{cnn_encoder_forward.1} parent=63 // pred_check_branch
        %2458 = sbr.rel (%p2456) target = $region68
      $region67: #{cnn_encoder_forward.1} parent=63 // pred_region
        %p2459 = scmp.lt.s32.totalorder %s21, 1
        %s2460 = scalar_select %p2459, %s21, 1
        %s2461 = smul.addr %s2460, 4
        %s2462 = scalar_lea.vmem %s9, %s2461
      $region68: #{cnn_encoder_forward.1} parent=63 // pred_fallthru
        _
    $region64: #{cnn_encoder_forward.1} parent=5 // pred_fallthru
      _
  $region6: #{cnn_encoder_forward.1} parent=0 // loop_footer
    %s19 = sadd.s32 1, %s15
  $region7: #{cnn_encoder_forward.1} parent=0 // loop_footer_branch
    %14 = sbr.rel target = $region3
  $region8: #{cnn_encoder_forward.1} parent=0 // loop_exit
    _

</llo_original>
